<compile_context>
chip_gen: v7x
topology: tpu7x:2x2x1
jax: 0.10.0
libtpu: 0.0.40
codegen_flags: <defaults>
</compile_context>

<pallas_src>
import functools

import jax
import jax.numpy as jnp
from jax import lax
from jax.experimental import pallas as pl
from jax.experimental.pallas import tpu as pltpu

_LN_EPS = 1e-5          # nn.LayerNorm default
_NEG_MASK = -1e30       # finite "minus infinity" for the causal mask


# ----------------------------------------------------------------------------
# helpers
# ----------------------------------------------------------------------------
def _pick_tile(s, max_tile=512):
    """Sequence tile size: the full extent if small, otherwise the largest
    multiple of 128 (fallback: multiple of 8) that divides s."""
    if s <= max_tile:
        return s
    for step in (128, 8):
        t = (max_tile // step) * step
        while t >= step:
            if s % t == 0:
                return t
            t -= step
    # TODO(synk): for awkward sequence lengths use a pl.cdiv grid + masked tail
    # instead of falling back to a single full-length tile.
    return s


def _layernorm(z, gamma, beta, eps):
    mean = jnp.mean(z, axis=-1, keepdims=True)
    var = jnp.mean(jnp.square(z - mean), axis=-1, keepdims=True)
    return (z - mean) * lax.rsqrt(var + eps) * gamma + beta


# ----------------------------------------------------------------------------
# Pallas kernels
# ----------------------------------------------------------------------------
def _fused_attn_ln_kernel(x_ref, y_ref, wq_ref, bq_ref, wk_ref, bk_ref,
                          wv_ref, bv_ref, g_ref, b_ref, o_ref,
                          kT_sc, v_sc, attn_sc,
                          *, causal, num_heads, head_dim, tile_q, eps):
    """One (batch, q-tile) grid cell: all heads + residual + LayerNorm fused.

    K/V are projected once per batch (q-tile index 0) and cached in bf16 VMEM
    scratch; K is cached pre-transposed.  Output is written directly in
    (tile_q, H*hd) layout (== torch.cat over heads along the feature dim).
    """
    i = pl.program_id(1)

    # ---- K/V projection: once per batch, cached across q-tiles -------------
    @pl.when(i == 0)
    def _():
        y_bf = y_ref[0].astype(jnp.bfloat16)                     # (S_kv, y_dim)
        k = jnp.dot(y_bf, wk_ref[...],
                    preferred_element_type=jnp.float32) + bk_ref[...]
        v = jnp.dot(y_bf, wv_ref[...],
                    preferred_element_type=jnp.float32) + bv_ref[...]
        kT_sc[...] = k.T.astype(jnp.bfloat16)                    # (D_out, S_kv)
        v_sc[...] = v.astype(jnp.bfloat16)                       # (S_kv, D_out)

    # ---- Q projection for this q-tile (scale folded in once) ---------------
    x = x_ref[0]                                                  # (tq, x_dim) f32
    q = jnp.dot(x.astype(jnp.bfloat16), wq_ref[...],
                preferred_element_type=jnp.float32) + bq_ref[...]
    q = q * (head_dim ** -0.5)                                    # fold 1/sqrt(hd)
    q_bf = q.astype(jnp.bfloat16)

    kT = kT_sc[...]                                               # (D_out, S_kv) bf16
    v = v_sc[...]                                                 # (S_kv, D_out) bf16
    tq = q.shape[0]
    sk = v.shape[0]

    if causal:
        # TODO(synk): for long S, additionally tile the KV axis and skip blocks past
        # the causal horizon (q_off + tq) to halve QK^T/PV flops and exp count.
        q_off = i * tile_q
        row = lax.broadcasted_iota(jnp.int32, (tq, sk), 0) + q_off
        col = lax.broadcasted_iota(jnp.int32, (tq, sk), 1)
        causal_bias = jnp.where(col > row, jnp.float32(_NEG_MASK), jnp.float32(0.0))

    for h in range(num_heads):                                    # static unrolled heads
        sl = slice(h * head_dim, (h + 1) * head_dim)
        # natural (tq, hd) x (hd, sk) MXU matmul — K already transposed in the cache
        s = jnp.dot(q_bf[:, sl], kT[sl, :], preferred_element_type=jnp.float32)
        if causal:
            s = s + causal_bias
        s = s - jnp.max(s, axis=-1, keepdims=True)                # f32 (VPU/XLU)
        p = jnp.exp(s)                                            # f32 (EUP)
        denom = jnp.sum(p, axis=-1, keepdims=True)                # f32
        pv = jnp.dot(p.astype(jnp.bfloat16), v[:, sl],
                     preferred_element_type=jnp.float32)          # (tq, hd) f32
        # deferred softmax normalization: scale the small PV result, not the (tq, sk) P
        attn_sc[:, sl] = pv * pl.reciprocal(denom, approx=True)

    # ---- fused residual + LayerNorm epilogue (all f32) ---------------------
    z = x + attn_sc[...]
    o_ref[0] = _layernorm(z, g_ref[...], b_ref[...], eps).astype(o_ref.dtype)


def _fused_ffn_ln_kernel(x_ref, w1_ref, b1_ref, w2_ref, b2_ref,
                         g_ref, b_ref, o_ref, *, eps):
    """Linear -> ReLU -> Linear -> +residual -> LayerNorm for one (batch, seq-tile)."""
    x = x_ref[0]                                                  # (tile_s, D) f32
    h = jnp.dot(x.astype(jnp.bfloat16), w1_ref[...],
                preferred_element_type=jnp.float32) + b1_ref[...]
    h = jnp.maximum(h, 0.0)
    f = jnp.dot(h.astype(jnp.bfloat16), w2_ref[...],
                preferred_element_type=jnp.float32) + b2_ref[...]
    z = x + f
    o_ref[0] = _layernorm(z, g_ref[...], b_ref[...], eps).astype(o_ref.dtype)
    # TODO(synk): for production D (>=1024, esp. v7x 64 MiB VMEM) tile Dh with a
    # K-reduction grid axis ("arbitrary") and an f32 VMEM accumulator instead of
    # keeping full w1/w2/hidden resident.


# ----------------------------------------------------------------------------
# Wrappers (pallas_call setup)
# ----------------------------------------------------------------------------
_VMEM_LIMIT = 64 * 1024 * 1024   # v5e/v6e: 128 MiB physical; v7x: lower to ~48 MiB


def fused_mha_ln(x, y, attn_p, ln_p, *, causal, num_heads, eps=_LN_EPS):
    B, S_x, x_dim = x.shape
    _, S_y, y_dim = y.shape
    D_out = attn_p["wq"].shape[1]
    hd = D_out // num_heads

    tile_q = _pick_tile(S_x)
    n_q = S_x // tile_q

    # bf16 weights at the boundary: halves resident VMEM and HBM DMA bytes,
    # feeds the bf16-native MXU.  Biases / LN params stay f32.
    wq = attn_p["wq"].astype(jnp.bfloat16)
    wk = attn_p["wk"].astype(jnp.bfloat16)
    wv = attn_p["wv"].astype(jnp.bfloat16)

    kernel = functools.partial(
        _fused_attn_ln_kernel, causal=causal, num_heads=num_heads,
        head_dim=hd, tile_q=tile_q, eps=eps)

    # K/V projection counted once per batch (matches the cached-KV kernel).
    flops = 2 * B * (S_x * x_dim * D_out + 2 * S_y * y_dim * D_out
                     + 2 * S_x * S_y * D_out)
    bytes_accessed = (4 * B * S_x * x_dim + 4 * B * S_y * y_dim
                      + 2 * (x_dim * D_out + 2 * y_dim * D_out)     # bf16 weights
                      + 4 * 5 * D_out + 4 * B * S_x * D_out)
    cost = pl.CostEstimate(flops=flops,
                           transcendentals=B * num_heads * S_x * S_y,
                           bytes_accessed=bytes_accessed)

    return pl.pallas_call(
        kernel,
        out_shape=jax.ShapeDtypeStruct((B, S_x, D_out), x.dtype),
        grid=(B, n_q),
        in_specs=[
            pl.BlockSpec((1, tile_q, x_dim), lambda b, i: (b, i, 0)),
            pl.BlockSpec((1, S_y, y_dim), lambda b, i: (b, 0, 0)),
            # weights/biases/LN params: constant index_map -> resident across the grid
            pl.BlockSpec((x_dim, D_out), lambda b, i: (0, 0)),
            pl.BlockSpec((1, D_out), lambda b, i: (0, 0)),
            pl.BlockSpec((y_dim, D_out), lambda b, i: (0, 0)),
            pl.BlockSpec((1, D_out), lambda b, i: (0, 0)),
            pl.BlockSpec((y_dim, D_out), lambda b, i: (0, 0)),
            pl.BlockSpec((1, D_out), lambda b, i: (0, 0)),
            pl.BlockSpec((1, D_out), lambda b, i: (0, 0)),
            pl.BlockSpec((1, D_out), lambda b, i: (0, 0)),
        ],
        out_specs=pl.BlockSpec((1, tile_q, D_out), lambda b, i: (b, i, 0)),
        scratch_shapes=[
            pltpu.VMEM((D_out, S_y), jnp.bfloat16),    # K^T cache (per batch)
            pltpu.VMEM((S_y, D_out), jnp.bfloat16),    # V   cache (per batch)
            pltpu.VMEM((tile_q, D_out), jnp.float32),  # per-head attention output
        ],
        compiler_params=pltpu.CompilerParams(
            # q-tile axis is "arbitrary": the K/V cache written at q-tile 0 must be
            # carried sequentially across the remaining q-tiles of the same batch.
            dimension_semantics=("parallel", "arbitrary"),
            vmem_limit_bytes=_VMEM_LIMIT),
        cost_estimate=cost,
    )(x, y, wq, attn_p["bq"], wk, attn_p["bk"], wv, attn_p["bv"],
      ln_p["gamma"], ln_p["beta"])


def fused_ffn_ln(x, ffn_p, ln_p, *, eps=_LN_EPS):
    B, S, D = x.shape
    Dh = ffn_p["w1"].shape[1]

    tile_s = _pick_tile(S)
    n_s = S // tile_s

    w1 = ffn_p["w1"].astype(jnp.bfloat16)
    w2 = ffn_p["w2"].astype(jnp.bfloat16)

    kernel = functools.partial(_fused_ffn_ln_kernel, eps=eps)
    cost = pl.CostEstimate(
        flops=4 * B * S * D * Dh,
        transcendentals=0,
        bytes_accessed=4 * 2 * B * S * D + 2 * 2 * D * Dh + 4 * (Dh + 3 * D))

    return pl.pallas_call(
        kernel,
        out_shape=jax.ShapeDtypeStruct((B, S, D), x.dtype),
        grid=(B, n_s),
        in_specs=[
            pl.BlockSpec((1, tile_s, D), lambda b, i: (b, i, 0)),
            pl.BlockSpec((D, Dh), lambda b, i: (0, 0)),
            pl.BlockSpec((1, Dh), lambda b, i: (0, 0)),
            pl.BlockSpec((Dh, D), lambda b, i: (0, 0)),
            pl.BlockSpec((1, D), lambda b, i: (0, 0)),
            pl.BlockSpec((1, D), lambda b, i: (0, 0)),
            pl.BlockSpec((1, D), lambda b, i: (0, 0)),
        ],
        out_specs=pl.BlockSpec((1, tile_s, D), lambda b, i: (b, i, 0)),
        compiler_params=pltpu.CompilerParams(
            dimension_semantics=("parallel", "parallel"),
            vmem_limit_bytes=_VMEM_LIMIT),
        cost_estimate=cost,
    )(x, w1, ffn_p["b1"], w2, ffn_p["b2"], ln_p["gamma"], ln_p["beta"])


def cross_attention_block(d_input, e_output, params, num_heads):
    # masked (causal) self-attention + add&norm (fused)
    d = fused_mha_ln(d_input, d_input, params["mmha"], params["ln1"],
                     causal=True, num_heads=num_heads)
    # cross-attention against encoder output + add&norm (fused)
    d = fused_mha_ln(d, e_output, params["mha"], params["ln2"],
                     causal=False, num_heads=num_heads)
    # position-wise feed-forward + add&norm (fused)
    d = fused_ffn_ln(d, params["ffn"], params["ln3"])
    return d


# ----------------------------------------------------------------------------
# Deterministic parameter init (synthetic, matches the module's shapes).
# Per-head weights are stored fused: column block [h*hd, (h+1)*hd) == head h,
# which reproduces torch.cat([head_h(x, y)], dim=-1) exactly.
# ----------------------------------------------------------------------------
def _init_mha_params(key, x_dim, y_dim, out_dim):
    ks = jax.random.split(key, 6)
    s = 0.1
    return {
        "wq": s * jax.random.normal(ks[0], (x_dim, out_dim), jnp.float32),
        "bq": s * jax.random.normal(ks[1], (1, out_dim), jnp.float32),
        "wk": s * jax.random.normal(ks[2], (y_dim, out_dim), jnp.float32),
        "bk": s * jax.random.normal(ks[3], (1, out_dim), jnp.float32),
        "wv": s * jax.random.normal(ks[4], (y_dim, out_dim), jnp.float32),
        "bv": s * jax.random.normal(ks[5], (1, out_dim), jnp.float32),
    }


def init_params(key, x_dim, y_dim):
    k1, k2, k3 = jax.random.split(key, 3)
    s = 0.1
    fk = jax.random.split(k3, 4)
    ln = lambda: {"gamma": jnp.ones((1, x_dim), jnp.float32),
                  "beta": jnp.zeros((1, x_dim), jnp.float32)}
    return {
        "mmha": _init_mha_params(k1, x_dim, x_dim, x_dim),
        "mha": _init_mha_params(k2, x_dim, y_dim, x_dim),
        "ln1": ln(), "ln2": ln(), "ln3": ln(),   # nn.LayerNorm default init
        "ffn": {
            "w1": s * jax.random.normal(fk[0], (x_dim, 4 * x_dim), jnp.float32),
            "b1": s * jax.random.normal(fk[1], (1, 4 * x_dim), jnp.float32),
            "w2": s * jax.random.normal(fk[2], (4 * x_dim, x_dim), jnp.float32),
            "b2": s * jax.random.normal(fk[3], (1, x_dim), jnp.float32),
        },
    }


# ----------------------------------------------------------------------------
# Pure-JAX f32 reference for a numerical sanity check
# ----------------------------------------------------------------------------
def _ref_mha(x, y, p, num_heads, causal):
    D = p["wq"].shape[1]
    hd = D // num_heads
    q = x @ p["wq"] + p["bq"][0]
    k = y @ p["wk"] + p["bk"][0]
    v = y @ p["wv"] + p["bv"][0]
    outs = []
    for h in range(num_heads):
        sl = slice(h * hd, (h + 1) * hd)
        s = jnp.einsum("bqd,bkd->bqk", q[..., sl], k[..., sl]) / jnp.sqrt(jnp.float32(hd))
        if causal:
            mask = jnp.triu(jnp.ones(s.shape[-2:], bool), k=1)
            s = jnp.where(mask[None], -jnp.inf, s)
        a = jax.nn.softmax(s, axis=-1)
        outs.append(jnp.einsum("bqk,bkd->bqd", a, v[..., sl]))
    return jnp.concatenate(outs, axis=-1)


def _ref_ln(z, p, eps=_LN_EPS):
    m = jnp.mean(z, -1, keepdims=True)
    v = jnp.mean(jnp.square(z - m), -1, keepdims=True)
    return (z - m) / jnp.sqrt(v + eps) * p["gamma"][0] + p["beta"][0]


def _ref_block(d, e, params, num_heads):
    d = _ref_ln(d + _ref_mha(d, d, params["mmha"], num_heads, True), params["ln1"])
    d = _ref_ln(d + _ref_mha(d, e, params["mha"], num_heads, False), params["ln2"])
    f = params["ffn"]
    h = jnp.maximum(d @ f["w1"] + f["b1"][0], 0.0) @ f["w2"] + f["b2"][0]
    return _ref_ln(d + h, params["ln3"])


# ----------------------------------------------------------------------------
if __name__ == "__main__":
    B, S_x, S_y = 2, 16, 24
    x_dim, y_dim, num_heads = 32, 48, 4

    key = jax.random.PRNGKey(0)
    k_in, k_enc, k_par = jax.random.split(key, 3)
    d_input = jax.random.normal(k_in, (B, S_x, x_dim), jnp.float32)
    e_output = jax.random.normal(k_enc, (B, S_y, y_dim), jnp.float32)
    params = init_params(k_par, x_dim, y_dim)

    out = cross_attention_block(d_input, e_output, params, num_heads)
    out = jax.block_until_ready(out)

    ref = _ref_block(d_input, e_output, params, num_heads)
    assert out.shape == (B, S_x, x_dim)
    # Tolerance accounts for bf16 MXU operands and the approx (EUP) softmax reciprocal;
    # the reference is computed fully in f32.
    max_err = float(jnp.max(jnp.abs(out - ref)))
    assert jnp.allclose(out, ref, atol=5e-2, rtol=5e-2), max_err

    print("KERNEL_OK")
</pallas_src>

<mosaic_0001>
module attributes {stable_mosaic.version = 11 : i64} {
  func.func @_fused_attn_ln_kernel(%arg0: i32, %arg1: i32, %arg2: memref<1x16x32xf32, #tpu.memory_space<vmem>>, %arg3: memref<1x16x32xf32, #tpu.memory_space<vmem>>, %arg4: memref<32x32xbf16, #tpu.memory_space<vmem>>, %arg5: memref<1x32xf32, #tpu.memory_space<vmem>>, %arg6: memref<32x32xbf16, #tpu.memory_space<vmem>>, %arg7: memref<1x32xf32, #tpu.memory_space<vmem>>, %arg8: memref<32x32xbf16, #tpu.memory_space<vmem>>, %arg9: memref<1x32xf32, #tpu.memory_space<vmem>>, %arg10: memref<1x32xf32, #tpu.memory_space<vmem>>, %arg11: memref<1x32xf32, #tpu.memory_space<vmem>>, %arg12: memref<1x16x32xf32, #tpu.memory_space<vmem>>, %arg13: memref<32x16xbf16, #tpu.memory_space<vmem>>, %arg14: memref<16x32xbf16, #tpu.memory_space<vmem>>, %arg15: memref<16x32xf32, #tpu.memory_space<vmem>>) attributes {dimension_semantics = [#tpu.dimension_semantics<parallel>, #tpu.dimension_semantics<arbitrary>], iteration_bounds = array<i64: 2, 1>, scalar_prefetch = 0 : i64, scratch_operands = 3 : i64, tpu.core_type = #tpu.core_type<tc>, window_params = [{transform_indices = @transform_0, window_bounds = array<i64: 1, 16, 32>}, {transform_indices = @transform_1, window_bounds = array<i64: 1, 16, 32>}, {pipeline_mode = #tpu.pipeline_mode<synchronous>, transform_indices = @transform_2, window_bounds = array<i64: 32, 32>}, {pipeline_mode = #tpu.pipeline_mode<synchronous>, transform_indices = @transform_3, window_bounds = array<i64: 1, 32>}, {pipeline_mode = #tpu.pipeline_mode<synchronous>, transform_indices = @transform_4, window_bounds = array<i64: 32, 32>}, {pipeline_mode = #tpu.pipeline_mode<synchronous>, transform_indices = @transform_5, window_bounds = array<i64: 1, 32>}, {pipeline_mode = #tpu.pipeline_mode<synchronous>, transform_indices = @transform_6, window_bounds = array<i64: 32, 32>}, {pipeline_mode = #tpu.pipeline_mode<synchronous>, transform_indices = @transform_7, window_bounds = array<i64: 1, 32>}, {pipeline_mode = #tpu.pipeline_mode<synchronous>, transform_indices = @transform_8, window_bounds = array<i64: 1, 32>}, {pipeline_mode = #tpu.pipeline_mode<synchronous>, transform_indices = @transform_9, window_bounds = array<i64: 1, 32>}, {transform_indices = @transform_10, window_bounds = array<i64: 1, 16, 32>}]} {
    %c0_i32 = arith.constant 0 : i32
    %0 = arith.cmpi eq, %arg1, %c0_i32 : i32
    %1 = arith.extui %0 : i1 to i32
    %c0_i32_0 = arith.constant 0 : i32
    %2 = arith.cmpi ne, %1, %c0_i32_0 : i32
    scf.if %2 {
      %c0_49 = arith.constant 0 : index
      %c0_50 = arith.constant 0 : index
      %c0_51 = arith.constant 0 : index
      %126 = vector.load %arg3[%c0_49, %c0_50, %c0_51] : memref<1x16x32xf32, #tpu.memory_space<vmem>>, vector<1x16x32xf32>
      %127 = vector.shape_cast %126 : vector<1x16x32xf32> to vector<16x32xf32>
      %128 = arith.truncf %127 : vector<16x32xf32> to vector<16x32xbf16>
      %c0_52 = arith.constant 0 : index
      %c0_53 = arith.constant 0 : index
      %129 = vector.load %arg6[%c0_52, %c0_53] : memref<32x32xbf16, #tpu.memory_space<vmem>>, vector<32x32xbf16>
      %cst_54 = arith.constant dense<0.000000e+00> : vector<16x32xf32>
      %130 = tpu.matmul %128, %129, %cst_54 {dimension_numbers = #tpu.dot_dimension_numbers<[1], [0], [0], [1], [0, 0, 1, 1], [], []>} : vector<16x32xbf16>, vector<32x32xbf16>, vector<16x32xf32> -> vector<16x32xf32>
      %c0_55 = arith.constant 0 : index
      %c0_56 = arith.constant 0 : index
      %131 = vector.load %arg7[%c0_55, %c0_56] : memref<1x32xf32, #tpu.memory_space<vmem>>, vector<1x32xf32>
      %132 = vector.broadcast %131 : vector<1x32xf32> to vector<16x32xf32>
      %133 = arith.addf %130, %132 : vector<16x32xf32>
      %c0_57 = arith.constant 0 : index
      %c0_58 = arith.constant 0 : index
      %134 = vector.load %arg8[%c0_57, %c0_58] : memref<32x32xbf16, #tpu.memory_space<vmem>>, vector<32x32xbf16>
      %cst_59 = arith.constant dense<0.000000e+00> : vector<16x32xf32>
      %135 = tpu.matmul %128, %134, %cst_59 {dimension_numbers = #tpu.dot_dimension_numbers<[1], [0], [0], [1], [0, 0, 1, 1], [], []>} : vector<16x32xbf16>, vector<32x32xbf16>, vector<16x32xf32> -> vector<16x32xf32>
      %c0_60 = arith.constant 0 : index
      %c0_61 = arith.constant 0 : index
      %136 = vector.load %arg9[%c0_60, %c0_61] : memref<1x32xf32, #tpu.memory_space<vmem>>, vector<1x32xf32>
      %137 = vector.broadcast %136 : vector<1x32xf32> to vector<16x32xf32>
      %138 = arith.addf %135, %137 : vector<16x32xf32>
      %139 = tpu.transpose %133, [1, 0] : vector<16x32xf32> -> vector<32x16xf32>
      %140 = arith.truncf %139 : vector<32x16xf32> to vector<32x16xbf16>
      %c0_62 = arith.constant 0 : index
      %c0_63 = arith.constant 0 : index
      %141 = vector.load %arg13[%c0_62, %c0_63] : memref<32x16xbf16, #tpu.memory_space<vmem>>, vector<32x16xbf16>
      tpu.vector_store %arg13[%c0_62, %c0_63], %140 {strides = array<i32>} : memref<32x16xbf16, #tpu.memory_space<vmem>>, vector<32x16xbf16>,
      %142 = arith.truncf %138 : vector<16x32xf32> to vector<16x32xbf16>
      %c0_64 = arith.constant 0 : index
      %c0_65 = arith.constant 0 : index
      %143 = vector.load %arg14[%c0_64, %c0_65] : memref<16x32xbf16, #tpu.memory_space<vmem>>, vector<16x32xbf16>
      tpu.vector_store %arg14[%c0_64, %c0_65], %142 {strides = array<i32>} : memref<16x32xbf16, #tpu.memory_space<vmem>>, vector<16x32xbf16>,
    } else {
    }
    %c0 = arith.constant 0 : index
    %c0_1 = arith.constant 0 : index
    %c0_2 = arith.constant 0 : index
    %3 = vector.load %arg2[%c0, %c0_1, %c0_2] : memref<1x16x32xf32, #tpu.memory_space<vmem>>, vector<1x16x32xf32>
    %4 = vector.shape_cast %3 : vector<1x16x32xf32> to vector<16x32xf32>
    %5 = arith.truncf %4 : vector<16x32xf32> to vector<16x32xbf16>
    %c0_3 = arith.constant 0 : index
    %c0_4 = arith.constant 0 : index
    %6 = vector.load %arg4[%c0_3, %c0_4] : memref<32x32xbf16, #tpu.memory_space<vmem>>, vector<32x32xbf16>
    %cst = arith.constant dense<0.000000e+00> : vector<16x32xf32>
    %7 = tpu.matmul %5, %6, %cst {dimension_numbers = #tpu.dot_dimension_numbers<[1], [0], [0], [1], [0, 0, 1, 1], [], []>} : vector<16x32xbf16>, vector<32x32xbf16>, vector<16x32xf32> -> vector<16x32xf32>
    %c0_5 = arith.constant 0 : index
    %c0_6 = arith.constant 0 : index
    %8 = vector.load %arg5[%c0_5, %c0_6] : memref<1x32xf32, #tpu.memory_space<vmem>>, vector<1x32xf32>
    %9 = vector.broadcast %8 : vector<1x32xf32> to vector<16x32xf32>
    %10 = arith.addf %7, %9 : vector<16x32xf32>
    %cst_7 = arith.constant 0.353553385 : f32
    %11 = vector.broadcast %cst_7 : f32 to vector<16x32xf32>
    %12 = arith.mulf %10, %11 : vector<16x32xf32>
    %13 = arith.truncf %12 : vector<16x32xf32> to vector<16x32xbf16>
    %c0_8 = arith.constant 0 : index
    %c0_9 = arith.constant 0 : index
    %14 = vector.load %arg13[%c0_8, %c0_9] : memref<32x16xbf16, #tpu.memory_space<vmem>>, vector<32x16xbf16>
    %c0_10 = arith.constant 0 : index
    %c0_11 = arith.constant 0 : index
    %15 = vector.load %arg14[%c0_10, %c0_11] : memref<16x32xbf16, #tpu.memory_space<vmem>>, vector<16x32xbf16>
    %c16_i32 = arith.constant 16 : i32
    %16 = arith.muli %arg1, %c16_i32 : i32
    %17 = tpu.iota {dimensions = array<i32: 0>} : vector<16x16xi32>
    %18 = vector.broadcast %16 : i32 to vector<16x16xi32>
    %19 = arith.addi %17, %18 : vector<16x16xi32>
    %20 = tpu.iota {dimensions = array<i32: 1>} : vector<16x16xi32>
    %21 = arith.cmpi sgt, %20, %19 : vector<16x16xi32>
    %cst_12 = arith.constant -1.000000e+30 : f32
    %cst_13 = arith.constant 0.000000e+00 : f32
    %22 = vector.broadcast %cst_12 : f32 to vector<16x16xf32>
    %23 = vector.broadcast %cst_13 : f32 to vector<16x16xf32>
    %24 = arith.select %21, %22, %23 : vector<16x16xi1>, vector<16x16xf32>
    %25 = vector.extract_strided_slice %13 {offsets = [0, 0], sizes = [16, 8], strides = [1, 1]} : vector<16x32xbf16> to vector<16x8xbf16>
    %26 = vector.extract_strided_slice %14 {offsets = [0, 0], sizes = [8, 16], strides = [1, 1]} : vector<32x16xbf16> to vector<8x16xbf16>
    %cst_14 = arith.constant dense<0.000000e+00> : vector<16x16xf32>
    %27 = tpu.matmul %25, %26, %cst_14 {dimension_numbers = #tpu.dot_dimension_numbers<[1], [0], [0], [1], [0, 0, 1, 1], [], []>} : vector<16x8xbf16>, vector<8x16xbf16>, vector<16x16xf32> -> vector<16x16xf32>
    %28 = arith.addf %27, %24 : vector<16x16xf32>
    %cst_15 = arith.constant dense<0xFF800000> : vector<16xf32>
    %29 = vector.multi_reduction <maximumf>, %28, %cst_15 [1] : vector<16x16xf32> to vector<16xf32>
    %30 = vector.shape_cast %29 : vector<16xf32> to vector<16x1xf32>
    %31 = vector.broadcast %30 : vector<16x1xf32> to vector<16x16xf32>
    %32 = arith.subf %28, %31 : vector<16x16xf32>
    %33 = math.exp %32 : vector<16x16xf32>
    %cst_16 = arith.constant dense<0.000000e+00> : vector<16xf32>
    %34 = vector.multi_reduction <add>, %33, %cst_16 [1] : vector<16x16xf32> to vector<16xf32>
    %35 = vector.shape_cast %34 : vector<16xf32> to vector<16x1xf32>
    %36 = arith.truncf %33 : vector<16x16xf32> to vector<16x16xbf16>
    %37 = vector.extract_strided_slice %15 {offsets = [0, 0], sizes = [16, 8], strides = [1, 1]} : vector<16x32xbf16> to vector<16x8xbf16>
    %cst_17 = arith.constant dense<0.000000e+00> : vector<16x8xf32>
    %38 = tpu.matmul %36, %37, %cst_17 {dimension_numbers = #tpu.dot_dimension_numbers<[1], [0], [0], [1], [0, 0, 1, 1], [], []>} : vector<16x16xbf16>, vector<16x8xbf16>, vector<16x8xf32> -> vector<16x8xf32>
    %39 = tpu.reciprocal %35 {approx = true} : vector<16x1xf32> -> vector<16x1xf32>
    %40 = vector.broadcast %39 : vector<16x1xf32> to vector<16x8xf32>
    %41 = arith.mulf %38, %40 : vector<16x8xf32>
    %c0_18 = arith.constant 0 : index
    %c0_19 = arith.constant 0 : index
    %42 = vector.load %arg15[%c0_18, %c0_19] : memref<16x32xf32, #tpu.memory_space<vmem>>, vector<16x8xf32>
    tpu.vector_store %arg15[%c0_18, %c0_19], %41 {strides = array<i32>} : memref<16x32xf32, #tpu.memory_space<vmem>>, vector<16x8xf32>,
    %43 = vector.extract_strided_slice %13 {offsets = [0, 8], sizes = [16, 8], strides = [1, 1]} : vector<16x32xbf16> to vector<16x8xbf16>
    %44 = vector.extract_strided_slice %14 {offsets = [8, 0], sizes = [8, 16], strides = [1, 1]} : vector<32x16xbf16> to vector<8x16xbf16>
    %cst_20 = arith.constant dense<0.000000e+00> : vector<16x16xf32>
    %45 = tpu.matmul %43, %44, %cst_20 {dimension_numbers = #tpu.dot_dimension_numbers<[1], [0], [0], [1], [0, 0, 1, 1], [], []>} : vector<16x8xbf16>, vector<8x16xbf16>, vector<16x16xf32> -> vector<16x16xf32>
    %46 = arith.addf %45, %24 : vector<16x16xf32>
    %cst_21 = arith.constant dense<0xFF800000> : vector<16xf32>
    %47 = vector.multi_reduction <maximumf>, %46, %cst_21 [1] : vector<16x16xf32> to vector<16xf32>
    %48 = vector.shape_cast %47 : vector<16xf32> to vector<16x1xf32>
    %49 = vector.broadcast %48 : vector<16x1xf32> to vector<16x16xf32>
    %50 = arith.subf %46, %49 : vector<16x16xf32>
    %51 = math.exp %50 : vector<16x16xf32>
    %cst_22 = arith.constant dense<0.000000e+00> : vector<16xf32>
    %52 = vector.multi_reduction <add>, %51, %cst_22 [1] : vector<16x16xf32> to vector<16xf32>
    %53 = vector.shape_cast %52 : vector<16xf32> to vector<16x1xf32>
    %54 = arith.truncf %51 : vector<16x16xf32> to vector<16x16xbf16>
    %55 = vector.extract_strided_slice %15 {offsets = [0, 8], sizes = [16, 8], strides = [1, 1]} : vector<16x32xbf16> to vector<16x8xbf16>
    %cst_23 = arith.constant dense<0.000000e+00> : vector<16x8xf32>
    %56 = tpu.matmul %54, %55, %cst_23 {dimension_numbers = #tpu.dot_dimension_numbers<[1], [0], [0], [1], [0, 0, 1, 1], [], []>} : vector<16x16xbf16>, vector<16x8xbf16>, vector<16x8xf32> -> vector<16x8xf32>
    %57 = tpu.reciprocal %53 {approx = true} : vector<16x1xf32> -> vector<16x1xf32>
    %58 = vector.broadcast %57 : vector<16x1xf32> to vector<16x8xf32>
    %59 = arith.mulf %56, %58 : vector<16x8xf32>
    %c0_24 = arith.constant 0 : index
    %c8 = arith.constant 8 : index
    %60 = vector.load %arg15[%c0_24, %c8] : memref<16x32xf32, #tpu.memory_space<vmem>>, vector<16x8xf32>
    tpu.vector_store %arg15[%c0_24, %c8], %59 {strides = array<i32>} : memref<16x32xf32, #tpu.memory_space<vmem>>, vector<16x8xf32>,
    %61 = vector.extract_strided_slice %13 {offsets = [0, 16], sizes = [16, 8], strides = [1, 1]} : vector<16x32xbf16> to vector<16x8xbf16>
    %62 = vector.extract_strided_slice %14 {offsets = [16, 0], sizes = [8, 16], strides = [1, 1]} : vector<32x16xbf16> to vector<8x16xbf16>
    %cst_25 = arith.constant dense<0.000000e+00> : vector<16x16xf32>
    %63 = tpu.matmul %61, %62, %cst_25 {dimension_numbers = #tpu.dot_dimension_numbers<[1], [0], [0], [1], [0, 0, 1, 1], [], []>} : vector<16x8xbf16>, vector<8x16xbf16>, vector<16x16xf32> -> vector<16x16xf32>
    %64 = arith.addf %63, %24 : vector<16x16xf32>
    %cst_26 = arith.constant dense<0xFF800000> : vector<16xf32>
    %65 = vector.multi_reduction <maximumf>, %64, %cst_26 [1] : vector<16x16xf32> to vector<16xf32>
    %66 = vector.shape_cast %65 : vector<16xf32> to vector<16x1xf32>
    %67 = vector.broadcast %66 : vector<16x1xf32> to vector<16x16xf32>
    %68 = arith.subf %64, %67 : vector<16x16xf32>
    %69 = math.exp %68 : vector<16x16xf32>
    %cst_27 = arith.constant dense<0.000000e+00> : vector<16xf32>
    %70 = vector.multi_reduction <add>, %69, %cst_27 [1] : vector<16x16xf32> to vector<16xf32>
    %71 = vector.shape_cast %70 : vector<16xf32> to vector<16x1xf32>
    %72 = arith.truncf %69 : vector<16x16xf32> to vector<16x16xbf16>
    %73 = vector.extract_strided_slice %15 {offsets = [0, 16], sizes = [16, 8], strides = [1, 1]} : vector<16x32xbf16> to vector<16x8xbf16>
    %cst_28 = arith.constant dense<0.000000e+00> : vector<16x8xf32>
    %74 = tpu.matmul %72, %73, %cst_28 {dimension_numbers = #tpu.dot_dimension_numbers<[1], [0], [0], [1], [0, 0, 1, 1], [], []>} : vector<16x16xbf16>, vector<16x8xbf16>, vector<16x8xf32> -> vector<16x8xf32>
    %75 = tpu.reciprocal %71 {approx = true} : vector<16x1xf32> -> vector<16x1xf32>
    %76 = vector.broadcast %75 : vector<16x1xf32> to vector<16x8xf32>
    %77 = arith.mulf %74, %76 : vector<16x8xf32>
    %c0_29 = arith.constant 0 : index
    %c16 = arith.constant 16 : index
    %78 = vector.load %arg15[%c0_29, %c16] : memref<16x32xf32, #tpu.memory_space<vmem>>, vector<16x8xf32>
    tpu.vector_store %arg15[%c0_29, %c16], %77 {strides = array<i32>} : memref<16x32xf32, #tpu.memory_space<vmem>>, vector<16x8xf32>,
    %79 = vector.extract_strided_slice %13 {offsets = [0, 24], sizes = [16, 8], strides = [1, 1]} : vector<16x32xbf16> to vector<16x8xbf16>
    %80 = vector.extract_strided_slice %14 {offsets = [24, 0], sizes = [8, 16], strides = [1, 1]} : vector<32x16xbf16> to vector<8x16xbf16>
    %cst_30 = arith.constant dense<0.000000e+00> : vector<16x16xf32>
    %81 = tpu.matmul %79, %80, %cst_30 {dimension_numbers = #tpu.dot_dimension_numbers<[1], [0], [0], [1], [0, 0, 1, 1], [], []>} : vector<16x8xbf16>, vector<8x16xbf16>, vector<16x16xf32> -> vector<16x16xf32>
    %82 = arith.addf %81, %24 : vector<16x16xf32>
    %cst_31 = arith.constant dense<0xFF800000> : vector<16xf32>
    %83 = vector.multi_reduction <maximumf>, %82, %cst_31 [1] : vector<16x16xf32> to vector<16xf32>
    %84 = vector.shape_cast %83 : vector<16xf32> to vector<16x1xf32>
    %85 = vector.broadcast %84 : vector<16x1xf32> to vector<16x16xf32>
    %86 = arith.subf %82, %85 : vector<16x16xf32>
    %87 = math.exp %86 : vector<16x16xf32>
    %cst_32 = arith.constant dense<0.000000e+00> : vector<16xf32>
    %88 = vector.multi_reduction <add>, %87, %cst_32 [1] : vector<16x16xf32> to vector<16xf32>
    %89 = vector.shape_cast %88 : vector<16xf32> to vector<16x1xf32>
    %90 = arith.truncf %87 : vector<16x16xf32> to vector<16x16xbf16>
    %91 = vector.extract_strided_slice %15 {offsets = [0, 24], sizes = [16, 8], strides = [1, 1]} : vector<16x32xbf16> to vector<16x8xbf16>
    %cst_33 = arith.constant dense<0.000000e+00> : vector<16x8xf32>
    %92 = tpu.matmul %90, %91, %cst_33 {dimension_numbers = #tpu.dot_dimension_numbers<[1], [0], [0], [1], [0, 0, 1, 1], [], []>} : vector<16x16xbf16>, vector<16x8xbf16>, vector<16x8xf32> -> vector<16x8xf32>
    %93 = tpu.reciprocal %89 {approx = true} : vector<16x1xf32> -> vector<16x1xf32>
    %94 = vector.broadcast %93 : vector<16x1xf32> to vector<16x8xf32>
    %95 = arith.mulf %92, %94 : vector<16x8xf32>
    %c0_34 = arith.constant 0 : index
    %c24 = arith.constant 24 : index
    %96 = vector.load %arg15[%c0_34, %c24] : memref<16x32xf32, #tpu.memory_space<vmem>>, vector<16x8xf32>
    tpu.vector_store %arg15[%c0_34, %c24], %95 {strides = array<i32>} : memref<16x32xf32, #tpu.memory_space<vmem>>, vector<16x8xf32>,
    %c0_35 = arith.constant 0 : index
    %c0_36 = arith.constant 0 : index
    %97 = vector.load %arg15[%c0_35, %c0_36] : memref<16x32xf32, #tpu.memory_space<vmem>>, vector<16x32xf32>
    %98 = arith.addf %4, %97 : vector<16x32xf32>
    %c0_37 = arith.constant 0 : index
    %c0_38 = arith.constant 0 : index
    %99 = vector.load %arg10[%c0_37, %c0_38] : memref<1x32xf32, #tpu.memory_space<vmem>>, vector<1x32xf32>
    %c0_39 = arith.constant 0 : index
    %c0_40 = arith.constant 0 : index
    %100 = vector.load %arg11[%c0_39, %c0_40] : memref<1x32xf32, #tpu.memory_space<vmem>>, vector<1x32xf32>
    %cst_41 = arith.constant dense<0.000000e+00> : vector<16xf32>
    %101 = vector.multi_reduction <add>, %98, %cst_41 [1] : vector<16x32xf32> to vector<16xf32>
    %102 = vector.shape_cast %101 : vector<16xf32> to vector<16x1xf32>
    %cst_42 = arith.constant 3.200000e+01 : f32
    %103 = vector.broadcast %cst_42 : f32 to vector<16x1xf32>
    %104 = arith.divf %102, %103 : vector<16x1xf32>
    %105 = vector.broadcast %104 : vector<16x1xf32> to vector<16x32xf32>
    %106 = arith.subf %98, %105 : vector<16x32xf32>
    %107 = arith.mulf %106, %106 : vector<16x32xf32>
    %cst_43 = arith.constant dense<0.000000e+00> : vector<16xf32>
    %108 = vector.multi_reduction <add>, %107, %cst_43 [1] : vector<16x32xf32> to vector<16xf32>
    %109 = vector.shape_cast %108 : vector<16xf32> to vector<16x1xf32>
    %cst_44 = arith.constant 3.200000e+01 : f32
    %110 = vector.broadcast %cst_44 : f32 to vector<16x1xf32>
    %111 = arith.divf %109, %110 : vector<16x1xf32>
    %112 = vector.broadcast %104 : vector<16x1xf32> to vector<16x32xf32>
    %113 = arith.subf %98, %112 : vector<16x32xf32>
    %cst_45 = arith.constant 9.99999974E-6 : f32
    %114 = vector.broadcast %cst_45 : f32 to vector<16x1xf32>
    %115 = arith.addf %111, %114 : vector<16x1xf32>
    %116 = math.rsqrt %115 : vector<16x1xf32>
    %117 = vector.broadcast %116 : vector<16x1xf32> to vector<16x32xf32>
    %118 = arith.mulf %113, %117 : vector<16x32xf32>
    %119 = vector.broadcast %99 : vector<1x32xf32> to vector<16x32xf32>
    %120 = arith.mulf %118, %119 : vector<16x32xf32>
    %121 = vector.broadcast %100 : vector<1x32xf32> to vector<16x32xf32>
    %122 = arith.addf %120, %121 : vector<16x32xf32>
    %c0_46 = arith.constant 0 : index
    %c0_47 = arith.constant 0 : index
    %c0_48 = arith.constant 0 : index
    %123 = vector.load %arg12[%c0_46, %c0_47, %c0_48] : memref<1x16x32xf32, #tpu.memory_space<vmem>>, vector<1x16x32xf32>
    %124 = vector.shape_cast %123 : vector<1x16x32xf32> to vector<16x32xf32>
    %125 = vector.shape_cast %122 : vector<16x32xf32> to vector<1x16x32xf32>
    tpu.vector_store %arg12[%c0_46, %c0_47, %c0_48], %125 {strides = array<i32>} : memref<1x16x32xf32, #tpu.memory_space<vmem>>, vector<1x16x32xf32>,
    return
  }
  func.func @transform_0(%arg0: i32, %arg1: i32) -> (i32, i32, i32) {
    %c0_i32 = arith.constant 0 : i32
    %c0_i32_0 = arith.constant 0 : i32
    return %arg0, %arg1, %c0_i32 : i32, i32, i32
  }
  func.func @transform_1(%arg0: i32, %arg1: i32) -> (i32, i32, i32) {
    %c0_i32 = arith.constant 0 : i32
    %c0_i32_0 = arith.constant 0 : i32
    %c0_i32_1 = arith.constant 0 : i32
    return %arg0, %c0_i32, %c0_i32_0 : i32, i32, i32
  }
  func.func @transform_2(%arg0: i32, %arg1: i32) -> (i32, i32) {
    %c0_i32 = arith.constant 0 : i32
    %c0_i32_0 = arith.constant 0 : i32
    %c0_i32_1 = arith.constant 0 : i32
    return %c0_i32, %c0_i32_0 : i32, i32
  }
  func.func @transform_3(%arg0: i32, %arg1: i32) -> (i32, i32) {
    %c0_i32 = arith.constant 0 : i32
    %c0_i32_0 = arith.constant 0 : i32
    %c0_i32_1 = arith.constant 0 : i32
    return %c0_i32, %c0_i32_0 : i32, i32
  }
  func.func @transform_4(%arg0: i32, %arg1: i32) -> (i32, i32) {
    %c0_i32 = arith.constant 0 : i32
    %c0_i32_0 = arith.constant 0 : i32
    %c0_i32_1 = arith.constant 0 : i32
    return %c0_i32, %c0_i32_0 : i32, i32
  }
  func.func @transform_5(%arg0: i32, %arg1: i32) -> (i32, i32) {
    %c0_i32 = arith.constant 0 : i32
    %c0_i32_0 = arith.constant 0 : i32
    %c0_i32_1 = arith.constant 0 : i32
    return %c0_i32, %c0_i32_0 : i32, i32
  }
  func.func @transform_6(%arg0: i32, %arg1: i32) -> (i32, i32) {
    %c0_i32 = arith.constant 0 : i32
    %c0_i32_0 = arith.constant 0 : i32
    %c0_i32_1 = arith.constant 0 : i32
    return %c0_i32, %c0_i32_0 : i32, i32
  }
  func.func @transform_7(%arg0: i32, %arg1: i32) -> (i32, i32) {
    %c0_i32 = arith.constant 0 : i32
    %c0_i32_0 = arith.constant 0 : i32
    %c0_i32_1 = arith.constant 0 : i32
    return %c0_i32, %c0_i32_0 : i32, i32
  }
  func.func @transform_8(%arg0: i32, %arg1: i32) -> (i32, i32) {
    %c0_i32 = arith.constant 0 : i32
    %c0_i32_0 = arith.constant 0 : i32
    %c0_i32_1 = arith.constant 0 : i32
    return %c0_i32, %c0_i32_0 : i32, i32
  }
  func.func @transform_9(%arg0: i32, %arg1: i32) -> (i32, i32) {
    %c0_i32 = arith.constant 0 : i32
    %c0_i32_0 = arith.constant 0 : i32
    %c0_i32_1 = arith.constant 0 : i32
    return %c0_i32, %c0_i32_0 : i32, i32
  }
  func.func @transform_10(%arg0: i32, %arg1: i32) -> (i32, i32, i32) {
    %c0_i32 = arith.constant 0 : i32
    %c0_i32_0 = arith.constant 0 : i32
    return %arg0, %arg1, %c0_i32 : i32, i32, i32
  }
}

</mosaic_0001>

<llo_original>
// kernel: tpu_custom_call.1
$region0: #{tpu_custom_call.1}
  #allocation0 [shape = 'u32[]', space=smem, size = 0x4, offset = 0x4, fixed_abs, tag = 'smem constant byte address 0x4 - core index']
  #allocation1 [shape = 'u32[144,128]{1,0:T(1,128)}', space=vmem, size = 0x12000, scoped, tag = 'internal scratch']
  #allocation2 [shape = 'bf16[32,16]{1,0:T(16,128)(2,1)}', space=vmem, size = 0x2000, scoped, tag = 'scratch operand']
  #allocation3 [shape = 'bf16[16,32]{1,0:T(16,128)(2,1)}', space=vmem, size = 0x1000, scoped, tag = 'scratch operand']
  #allocation4 [shape = 'f32[16,32]{1,0:T(8,128)}', space=vmem, size = 0x2000, scoped, tag = 'scratch operand']
  %s0 = inlined_call_operand.hbm [shape: f32[2,16,32], index: 0, kind: input, shape index: {}]
  %s1 = inlined_call_operand.hbm [shape: f32[2,16,32], index: 1, kind: input, shape index: {}]
  %s2 = inlined_call_operand.hbm [shape: bf16[32,32], index: 2, kind: input, shape index: {}]
  %s3 = inlined_call_operand.hbm [shape: f32[1,32], index: 3, kind: input, shape index: {}]
  %s4 = inlined_call_operand.hbm [shape: bf16[32,32], index: 4, kind: input, shape index: {}]
  %s5 = inlined_call_operand.hbm [shape: f32[1,32], index: 5, kind: input, shape index: {}]
  %s6 = inlined_call_operand.hbm [shape: bf16[32,32], index: 6, kind: input, shape index: {}]
  %s7 = inlined_call_operand.hbm [shape: f32[1,32], index: 7, kind: input, shape index: {}]
  %s8 = inlined_call_operand.hbm [shape: f32[1,32], index: 8, kind: input, shape index: {}]
  %s9 = inlined_call_operand.hbm [shape: f32[1,32], index: 9, kind: input, shape index: {}]
  %s10 = inlined_call_operand.hbm [shape: f32[2,16,32], index: 10, kind: output, shape index: {}]
  %s11 = sld [smem:[#allocation0]]
  $region117: #{tpu_custom_call.1} parent=0
    _
  %s13 = ssub.s32 1, %s11
  %s14 = scalar_select 0, %s13, %s11
  $region1: #{tpu_custom_call.1} parent=0
    #allocation5 [shape = 'u8[16384]{0}', space=vmem, size = 0x4000, scoped, tag = 'input window, operand 0']
    #allocation6 [shape = 's32[2]{0}', space=sflag, size = 0x8, scoped, tag = 'scoped memory for tpu_custom_call.1']
    #allocation7 [shape = 's32[2]{0}', space=sflag, size = 0x8, scoped, tag = 'scoped memory for tpu_custom_call.1']
    #allocation8 [shape = 'u8[16384]{0}', space=vmem, size = 0x4000, scoped, tag = 'input window, operand 1']
    #allocation9 [shape = 's32[2]{0}', space=sflag, size = 0x8, scoped, tag = 'scoped memory for tpu_custom_call.1']
    #allocation10 [shape = 'u8[8192]{0}', space=vmem, size = 0x2000, scoped, tag = 'input window, operand 2, single buffered']
    #allocation11 [shape = 'u8[512]{0}', space=vmem, size = 0x400, scoped, tag = 'input window, operand 3, single buffered']
    #allocation12 [shape = 's32[1]{0}', space=sflag, size = 0x4, scoped, tag = 'scoped memory for tpu_custom_call.1']
    #allocation13 [shape = 'u8[8192]{0}', space=vmem, size = 0x2000, scoped, tag = 'input window, operand 4, single buffered']
    #allocation14 [shape = 'u8[512]{0}', space=vmem, size = 0x400, scoped, tag = 'input window, operand 5, single buffered']
    #allocation15 [shape = 's32[1]{0}', space=sflag, size = 0x4, scoped, tag = 'scoped memory for tpu_custom_call.1']
    #allocation16 [shape = 'u8[8192]{0}', space=vmem, size = 0x2000, scoped, tag = 'input window, operand 6, single buffered']
    #allocation17 [shape = 'u8[512]{0}', space=vmem, size = 0x400, scoped, tag = 'input window, operand 7, single buffered']
    #allocation18 [shape = 's32[1]{0}', space=sflag, size = 0x4, scoped, tag = 'scoped memory for tpu_custom_call.1']
    #allocation19 [shape = 'u8[512]{0}', space=vmem, size = 0x400, scoped, tag = 'input window, operand 8, single buffered']
    #allocation20 [shape = 'u8[512]{0}', space=vmem, size = 0x400, scoped, tag = 'input window, operand 9, single buffered']
    #allocation21 [shape = 's32[1]{0}', space=sflag, size = 0x4, scoped, tag = 'scoped memory for tpu_custom_call.1']
    #allocation22 [shape = 'u8[16384]{0}', space=vmem, size = 0x4000, scoped, tag = 'output window, operand 0']
    %15 = vsyncpa [#allocation6], 0
    %s16 = scalar_lea.sflag [#allocation6], 1
    %17 = vsyncpa %s16, 0
    %18 = vsyncpa [#allocation9], 0
    %s19 = scalar_lea.sflag [#allocation9], 1
    %20 = vsyncpa %s19, 0
    %21 = vsyncpa [#allocation12], 0
    %22 = vsyncpa [#allocation15], 0
    %23 = vsyncpa [#allocation18], 0
    %24 = vsyncpa [#allocation21], 0
    %25 = vsyncpa [#allocation7], 0
    %s26 = scalar_lea.sflag [#allocation7], 1
    %27 = vsyncpa %s26, 0
    loop: start=0, step=1, limit=4
    $region2: #{tpu_custom_call.1} parent=1 // loop_pre_header
      _
    $region3: #{tpu_custom_call.1} parent=1 // loop_header
      %s29 = sphi 0, %s33
      %p30 = scmp.ge.s32.totalorder %s29, 4
      %s36 = sphi 0, %s48
      %s37 = sphi 0, %s44
      %s38 = sphi 0, %s36
      %s39 = sphi 0, %s37
      %s40 = sphi 0, %s38
      %s41 = sphi 0, %s39
      %s53 = sphi 0, %s55
      %s56 = sphi 0, %s53
      %s57 = sphi 0, %s56
      %s73 = sphi 0, %s57
      %s79 = sphi 0, %s81
      %s82 = sphi 0, %s79
      %s83 = sphi 0, %s82
      %s99 = sphi 0, %s83
      %s103 = sphi 0, %s103
      %s105 = sphi 0, %s103
      %s106 = sphi 0, %s105
      %s120 = sphi 0, %s106
      %s124 = sphi 0, %s124
      %s126 = sphi 0, %s124
      %s127 = sphi 0, %s126
      %s141 = sphi 0, %s127
      %s145 = sphi 0, %s145
      %s147 = sphi 0, %s145
      %s148 = sphi 0, %s147
      %s162 = sphi 0, %s148
      %s166 = sphi 0, %s166
      %s168 = sphi 0, %s166
      %s169 = sphi 0, %s168
      %s183 = sphi 0, %s169
      %s187 = sphi 0, %s187
      %s189 = sphi 0, %s187
      %s190 = sphi 0, %s189
      %s204 = sphi 0, %s190
      %s208 = sphi 0, %s208
      %s210 = sphi 0, %s208
      %s211 = sphi 0, %s210
      %s225 = sphi 0, %s211
      %s229 = sphi 0, %s229
      %s231 = sphi 0, %s229
      %s232 = sphi 0, %s231
      %s246 = sphi 0, %s232
      %s250 = sphi 0, %s250
      %s252 = sphi 0, %s250
      %s253 = sphi 0, %s252
      %s267 = sphi 0, %s253
      %s275 = sphi 0, %s277
      %s278 = sphi 0, %s275
      %s279 = sphi 0, %s278
      %s295 = sphi 0, %s279
    $region4: #{tpu_custom_call.1} parent=1 // loop_header_branch
      %32 = sbr.rel (%p30) target = $region8
    $region5: #{tpu_custom_call.1} parent=1 // loop_body
      %s34 = ssub.s32 %s29, 1
      %s35 = ssub.s32 %s29, 2
      %s42 = sadd.s32 1, %s37
      %p43 = scmp.ge.s32.totalorder %s42, 1
      %s44 = scalar_select %p43, 0, %s42
      %s45 = sadd.s32 1, %s36
      %s46 = scalar_select %p43, %s45, %s36
      %p47 = scmp.ge.s32.totalorder %s46, 2
      %s48 = scalar_select %p47, 0, %s46
      %s49 = ssub.s32 %s36, %s48
      %s50 = ssub.s32 %s37, %s44
      %s51 = sor.u32 %s49, %s50
      %p52 = scmp.eq.s32.totalorder %s51, 0
      %s54 = sadd.s32 %s53, 1
      %s55 = scalar_select %p52, %s53, %s54
      %p58 = pneg %p52
      %p59 = scmp.eq.s32.totalorder %s29, 1
      %p60 = por %p58, %p59
      %p61 = scmp.ne.s32.totalorder %s53, %s56
      %p62 = scmp.eq.s32.totalorder %s29, 0
      %p63 = por %p61, %p62
      %p64 = scmp.ne.s32.totalorder %s53, %s56
      %p65 = scmp.eq.s32.totalorder %s34, 1
      %p66 = por %p64, %p65
      %p67 = scmp.ne.s32.totalorder %s56, %s57
      %p68 = scmp.eq.s32.totalorder %s34, 0
      %p69 = por %p67, %p68
      %p70 = scmp.ne.s32.totalorder %s56, %s57
      %p71 = scmp.eq.s32.totalorder %s35, 1
      %p72 = por %p70, %p71
      %p74 = scmp.ne.s32.totalorder %s57, %s73
      %p75 = scmp.eq.s32.totalorder %s35, 0
      %p76 = por %p74, %p75
      %s77 = ssub.s32 %s36, %s48
      %p78 = scmp.eq.s32.totalorder %s77, 0
      %s80 = sadd.s32 %s79, 1
      %s81 = scalar_select %p78, %s79, %s80
      %p84 = pneg %p78
      %p85 = scmp.eq.s32.totalorder %s29, 1
      %p86 = por %p84, %p85
      %p87 = scmp.ne.s32.totalorder %s79, %s82
      %p88 = scmp.eq.s32.totalorder %s29, 0
      %p89 = por %p87, %p88
      %p90 = scmp.ne.s32.totalorder %s79, %s82
      %p91 = scmp.eq.s32.totalorder %s34, 1
      %p92 = por %p90, %p91
      %p93 = scmp.ne.s32.totalorder %s82, %s83
      %p94 = scmp.eq.s32.totalorder %s34, 0
      %p95 = por %p93, %p94
      %p96 = scmp.ne.s32.totalorder %s82, %s83
      %p97 = scmp.eq.s32.totalorder %s35, 1
      %p98 = por %p96, %p97
      %p100 = scmp.ne.s32.totalorder %s83, %s99
      %p101 = scmp.eq.s32.totalorder %s35, 0
      %p102 = por %p100, %p101
      %s104 = sadd.s32 %s103, 1
      %p107 = scmp.eq.s32.totalorder %s29, 1
      %p108 = scmp.ne.s32.totalorder %s103, %s105
      %p109 = scmp.eq.s32.totalorder %s29, 0
      %p110 = por %p108, %p109
      %p111 = scmp.ne.s32.totalorder %s103, %s105
      %p112 = scmp.eq.s32.totalorder %s34, 1
      %p113 = por %p111, %p112
      %p114 = scmp.ne.s32.totalorder %s105, %s106
      %p115 = scmp.eq.s32.totalorder %s34, 0
      %p116 = por %p114, %p115
      %p117 = scmp.ne.s32.totalorder %s105, %s106
      %p118 = scmp.eq.s32.totalorder %s35, 1
      %p119 = por %p117, %p118
      %p121 = scmp.ne.s32.totalorder %s106, %s120
      %p122 = scmp.eq.s32.totalorder %s35, 0
      %p123 = por %p121, %p122
      %s125 = sadd.s32 %s124, 1
      %p128 = scmp.eq.s32.totalorder %s29, 1
      %p129 = scmp.ne.s32.totalorder %s124, %s126
      %p130 = scmp.eq.s32.totalorder %s29, 0
      %p131 = por %p129, %p130
      %p132 = scmp.ne.s32.totalorder %s124, %s126
      %p133 = scmp.eq.s32.totalorder %s34, 1
      %p134 = por %p132, %p133
      %p135 = scmp.ne.s32.totalorder %s126, %s127
      %p136 = scmp.eq.s32.totalorder %s34, 0
      %p137 = por %p135, %p136
      %p138 = scmp.ne.s32.totalorder %s126, %s127
      %p139 = scmp.eq.s32.totalorder %s35, 1
      %p140 = por %p138, %p139
      %p142 = scmp.ne.s32.totalorder %s127, %s141
      %p143 = scmp.eq.s32.totalorder %s35, 0
      %p144 = por %p142, %p143
      %s146 = sadd.s32 %s145, 1
      %p149 = scmp.eq.s32.totalorder %s29, 1
      %p150 = scmp.ne.s32.totalorder %s145, %s147
      %p151 = scmp.eq.s32.totalorder %s29, 0
      %p152 = por %p150, %p151
      %p153 = scmp.ne.s32.totalorder %s145, %s147
      %p154 = scmp.eq.s32.totalorder %s34, 1
      %p155 = por %p153, %p154
      %p156 = scmp.ne.s32.totalorder %s147, %s148
      %p157 = scmp.eq.s32.totalorder %s34, 0
      %p158 = por %p156, %p157
      %p159 = scmp.ne.s32.totalorder %s147, %s148
      %p160 = scmp.eq.s32.totalorder %s35, 1
      %p161 = por %p159, %p160
      %p163 = scmp.ne.s32.totalorder %s148, %s162
      %p164 = scmp.eq.s32.totalorder %s35, 0
      %p165 = por %p163, %p164
      %s167 = sadd.s32 %s166, 1
      %p170 = scmp.eq.s32.totalorder %s29, 1
      %p171 = scmp.ne.s32.totalorder %s166, %s168
      %p172 = scmp.eq.s32.totalorder %s29, 0
      %p173 = por %p171, %p172
      %p174 = scmp.ne.s32.totalorder %s166, %s168
      %p175 = scmp.eq.s32.totalorder %s34, 1
      %p176 = por %p174, %p175
      %p177 = scmp.ne.s32.totalorder %s168, %s169
      %p178 = scmp.eq.s32.totalorder %s34, 0
      %p179 = por %p177, %p178
      %p180 = scmp.ne.s32.totalorder %s168, %s169
      %p181 = scmp.eq.s32.totalorder %s35, 1
      %p182 = por %p180, %p181
      %p184 = scmp.ne.s32.totalorder %s169, %s183
      %p185 = scmp.eq.s32.totalorder %s35, 0
      %p186 = por %p184, %p185
      %s188 = sadd.s32 %s187, 1
      %p191 = scmp.eq.s32.totalorder %s29, 1
      %p192 = scmp.ne.s32.totalorder %s187, %s189
      %p193 = scmp.eq.s32.totalorder %s29, 0
      %p194 = por %p192, %p193
      %p195 = scmp.ne.s32.totalorder %s187, %s189
      %p196 = scmp.eq.s32.totalorder %s34, 1
      %p197 = por %p195, %p196
      %p198 = scmp.ne.s32.totalorder %s189, %s190
      %p199 = scmp.eq.s32.totalorder %s34, 0
      %p200 = por %p198, %p199
      %p201 = scmp.ne.s32.totalorder %s189, %s190
      %p202 = scmp.eq.s32.totalorder %s35, 1
      %p203 = por %p201, %p202
      %p205 = scmp.ne.s32.totalorder %s190, %s204
      %p206 = scmp.eq.s32.totalorder %s35, 0
      %p207 = por %p205, %p206
      %s209 = sadd.s32 %s208, 1
      %p212 = scmp.eq.s32.totalorder %s29, 1
      %p213 = scmp.ne.s32.totalorder %s208, %s210
      %p214 = scmp.eq.s32.totalorder %s29, 0
      %p215 = por %p213, %p214
      %p216 = scmp.ne.s32.totalorder %s208, %s210
      %p217 = scmp.eq.s32.totalorder %s34, 1
      %p218 = por %p216, %p217
      %p219 = scmp.ne.s32.totalorder %s210, %s211
      %p220 = scmp.eq.s32.totalorder %s34, 0
      %p221 = por %p219, %p220
      %p222 = scmp.ne.s32.totalorder %s210, %s211
      %p223 = scmp.eq.s32.totalorder %s35, 1
      %p224 = por %p222, %p223
      %p226 = scmp.ne.s32.totalorder %s211, %s225
      %p227 = scmp.eq.s32.totalorder %s35, 0
      %p228 = por %p226, %p227
      %s230 = sadd.s32 %s229, 1
      %p233 = scmp.eq.s32.totalorder %s29, 1
      %p234 = scmp.ne.s32.totalorder %s229, %s231
      %p235 = scmp.eq.s32.totalorder %s29, 0
      %p236 = por %p234, %p235
      %p237 = scmp.ne.s32.totalorder %s229, %s231
      %p238 = scmp.eq.s32.totalorder %s34, 1
      %p239 = por %p237, %p238
      %p240 = scmp.ne.s32.totalorder %s231, %s232
      %p241 = scmp.eq.s32.totalorder %s34, 0
      %p242 = por %p240, %p241
      %p243 = scmp.ne.s32.totalorder %s231, %s232
      %p244 = scmp.eq.s32.totalorder %s35, 1
      %p245 = por %p243, %p244
      %p247 = scmp.ne.s32.totalorder %s232, %s246
      %p248 = scmp.eq.s32.totalorder %s35, 0
      %p249 = por %p247, %p248
      %s251 = sadd.s32 %s250, 1
      %p254 = scmp.eq.s32.totalorder %s29, 1
      %p255 = scmp.ne.s32.totalorder %s250, %s252
      %p256 = scmp.eq.s32.totalorder %s29, 0
      %p257 = por %p255, %p256
      %p258 = scmp.ne.s32.totalorder %s250, %s252
      %p259 = scmp.eq.s32.totalorder %s34, 1
      %p260 = por %p258, %p259
      %p261 = scmp.ne.s32.totalorder %s252, %s253
      %p262 = scmp.eq.s32.totalorder %s34, 0
      %p263 = por %p261, %p262
      %p264 = scmp.ne.s32.totalorder %s252, %s253
      %p265 = scmp.eq.s32.totalorder %s35, 1
      %p266 = por %p264, %p265
      %p268 = scmp.ne.s32.totalorder %s253, %s267
      %p269 = scmp.eq.s32.totalorder %s35, 0
      %p270 = por %p268, %p269
      %s271 = ssub.s32 %s36, %s48
      %s272 = ssub.s32 %s37, %s44
      %s273 = sor.u32 %s271, %s272
      %p274 = scmp.eq.s32.totalorder %s273, 0
      %s276 = sadd.s32 %s275, 1
      %s277 = scalar_select %p274, %s275, %s276
      %p280 = pneg %p274
      %p281 = scmp.eq.s32.totalorder %s29, 1
      %p282 = por %p280, %p281
      %p283 = scmp.ne.s32.totalorder %s275, %s278
      %p284 = scmp.eq.s32.totalorder %s29, 0
      %p285 = por %p283, %p284
      %p286 = scmp.ne.s32.totalorder %s275, %s278
      %p287 = scmp.eq.s32.totalorder %s34, 1
      %p288 = por %p286, %p287
      %p289 = scmp.ne.s32.totalorder %s278, %s279
      %p290 = scmp.eq.s32.totalorder %s34, 0
      %p291 = por %p289, %p290
      %p292 = scmp.ne.s32.totalorder %s278, %s279
      %p293 = scmp.eq.s32.totalorder %s35, 1
      %p294 = por %p292, %p293
      %p296 = scmp.ne.s32.totalorder %s279, %s295
      %p297 = scmp.eq.s32.totalorder %s35, 0
      %p298 = por %p296, %p297
      %p299 = scmp.le.s32.totalorder 1, %s29
      %p300 = scmp.lt.s32.totalorder %s29, 3
      %p301 = pnand %p299, %p300
      %p302 = pneg %p301
      // Predicated region
      $region9: #{tpu_custom_call.1} parent=5 // pred_check
        _
      $region10: #{tpu_custom_call.1} parent=5 // pred_check_branch
        %304 = sbr.rel (%p301) target = $region12
      $region11: #{tpu_custom_call.1} parent=5 // pred_region
        %s305 = ssub.s32 %s29, 1
        // Predicated region
        $region13: #{tpu_custom_call.1} parent=11 // pred_check
          %p306 = pneg %p116
        $region14: #{tpu_custom_call.1} parent=11 // pred_check_branch
          %308 = sbr.rel (%p306) target = $region16
        $region15: #{tpu_custom_call.1} parent=11 // pred_region
          %s310 = ssub.s32 256, 256
          %311 = vsyncadd [#allocation9], %s310
          %s312 = sshll.u32 [#allocation10], 4
          %s313 = int_to_ptr.vmem [resolvable:$true] %s312
          %318 = dma.hbm_to_vmem [thread:$0]  %s2, 256, %s313, [#allocation9], 64, 64, 4
        $region16: #{tpu_custom_call.1} parent=11 // pred_fallthru
          _
        // Predicated region
        $region17: #{tpu_custom_call.1} parent=11 // pred_check
          %p319 = pneg %p137
        $region18: #{tpu_custom_call.1} parent=11 // pred_check_branch
          %321 = sbr.rel (%p319) target = $region20
        $region19: #{tpu_custom_call.1} parent=11 // pred_region
          %s323 = ssub.s32 16, 16
          %324 = vsyncadd [#allocation12], %s323
          %s326 = sshll.u32 [#allocation11], 4
          %s327 = int_to_ptr.vmem [resolvable:$true] %s326
          %329 = dma.hbm_to_vmem [thread:$0]  %s3, 16, %s327, [#allocation12]
        $region20: #{tpu_custom_call.1} parent=11 // pred_fallthru
          _
        // Predicated region
        $region21: #{tpu_custom_call.1} parent=11 // pred_check
          %p330 = pneg %p158
        $region22: #{tpu_custom_call.1} parent=11 // pred_check_branch
          %332 = sbr.rel (%p330) target = $region24
        $region23: #{tpu_custom_call.1} parent=11 // pred_region
          %s334 = ssub.s32 256, 256
          %335 = vsyncadd [#allocation12], %s334
          %s336 = sshll.u32 [#allocation13], 4
          %s337 = int_to_ptr.vmem [resolvable:$true] %s336
          %342 = dma.hbm_to_vmem [thread:$0]  %s4, 256, %s337, [#allocation12], 64, 64, 4
        $region24: #{tpu_custom_call.1} parent=11 // pred_fallthru
          _
        // Predicated region
        $region25: #{tpu_custom_call.1} parent=11 // pred_check
          %p343 = pneg %p179
        $region26: #{tpu_custom_call.1} parent=11 // pred_check_branch
          %345 = sbr.rel (%p343) target = $region28
        $region27: #{tpu_custom_call.1} parent=11 // pred_region
          %s347 = ssub.s32 16, 16
          %348 = vsyncadd [#allocation15], %s347
          %s350 = sshll.u32 [#allocation14], 4
          %s351 = int_to_ptr.vmem [resolvable:$true] %s350
          %353 = dma.hbm_to_vmem [thread:$0]  %s5, 16, %s351, [#allocation15]
        $region28: #{tpu_custom_call.1} parent=11 // pred_fallthru
          _
        // Predicated region
        $region29: #{tpu_custom_call.1} parent=11 // pred_check
          %p354 = pneg %p200
        $region30: #{tpu_custom_call.1} parent=11 // pred_check_branch
          %356 = sbr.rel (%p354) target = $region32
        $region31: #{tpu_custom_call.1} parent=11 // pred_region
          %s358 = ssub.s32 256, 256
          %359 = vsyncadd [#allocation15], %s358
          %s360 = sshll.u32 [#allocation16], 4
          %s361 = int_to_ptr.vmem [resolvable:$true] %s360
          %366 = dma.hbm_to_vmem [thread:$0]  %s6, 256, %s361, [#allocation15], 64, 64, 4
        $region32: #{tpu_custom_call.1} parent=11 // pred_fallthru
          _
        // Predicated region
        $region33: #{tpu_custom_call.1} parent=11 // pred_check
          %p367 = pneg %p221
        $region34: #{tpu_custom_call.1} parent=11 // pred_check_branch
          %369 = sbr.rel (%p367) target = $region36
        $region35: #{tpu_custom_call.1} parent=11 // pred_region
          %s371 = ssub.s32 16, 16
          %372 = vsyncadd [#allocation18], %s371
          %s374 = sshll.u32 [#allocation17], 4
          %s375 = int_to_ptr.vmem [resolvable:$true] %s374
          %377 = dma.hbm_to_vmem [thread:$0]  %s7, 16, %s375, [#allocation18]
        $region36: #{tpu_custom_call.1} parent=11 // pred_fallthru
          _
        // Predicated region
        $region37: #{tpu_custom_call.1} parent=11 // pred_check
          %p378 = pneg %p242
        $region38: #{tpu_custom_call.1} parent=11 // pred_check_branch
          %380 = sbr.rel (%p378) target = $region40
        $region39: #{tpu_custom_call.1} parent=11 // pred_region
          %s382 = ssub.s32 16, 16
          %383 = vsyncadd [#allocation18], %s382
          %s385 = sshll.u32 [#allocation19], 4
          %s386 = int_to_ptr.vmem [resolvable:$true] %s385
          %388 = dma.hbm_to_vmem [thread:$0]  %s8, 16, %s386, [#allocation18]
        $region40: #{tpu_custom_call.1} parent=11 // pred_fallthru
          _
        // Predicated region
        $region41: #{tpu_custom_call.1} parent=11 // pred_check
          %p389 = pneg %p263
        $region42: #{tpu_custom_call.1} parent=11 // pred_check_branch
          %391 = sbr.rel (%p389) target = $region44
        $region43: #{tpu_custom_call.1} parent=11 // pred_region
          %s393 = ssub.s32 16, 16
          %394 = vsyncadd [#allocation21], %s393
          %s396 = sshll.u32 [#allocation20], 4
          %s397 = int_to_ptr.vmem [resolvable:$true] %s396
          %399 = dma.hbm_to_vmem [thread:$0]  %s9, 16, %s397, [#allocation21]
        $region44: #{tpu_custom_call.1} parent=11 // pred_fallthru
          _
      $region12: #{tpu_custom_call.1} parent=5 // pred_fallthru
        _
      %p400 = scmp.lt.s32.totalorder %s29, 2
      // Predicated region
      $region45: #{tpu_custom_call.1} parent=5 // pred_check
        %p401 = pneg %p400
      $region46: #{tpu_custom_call.1} parent=5 // pred_check_branch
        %403 = sbr.rel (%p401) target = $region48
      $region47: #{tpu_custom_call.1} parent=5 // pred_region
        // Predicated region
        $region49: #{tpu_custom_call.1} parent=47 // pred_check
          %p404 = pneg %p63
        $region50: #{tpu_custom_call.1} parent=47 // pred_check_branch
          %406 = sbr.rel (%p404) target = $region52
        $region51: #{tpu_custom_call.1} parent=47 // pred_region
          %s407 = sand.u32 %s53, 1
          %s408 = scalar_lea.sflag [#allocation6], %s407
          %s409 = sand.u32 %s53, 1
          %s410 = smul.addr %s409, 16
          %s411 = scalar_lea.vmem [#allocation5], %s410
          %s412 = smul.u32 2, %s37
          %s414 = ssub.s32 256, 256
          %415 = vsyncadd %s408, %s414
          %s416 = smul.addr %s36, 2
          %s417 = sadd.s32 %s412, %s416
          %s418 = smul.addr %s417, 128
          %s419 = scalar_lea.hbm %s0, %s418
          %s420 = sshll.u32 %s411, 4
          %s421 = int_to_ptr.vmem [resolvable:$true] %s420
          %426 = dma.hbm_to_vmem [thread:$0]  %s419, 256, %s421, %s408, 128, 128, 8
        $region52: #{tpu_custom_call.1} parent=47 // pred_fallthru
          _
        // Predicated region
        $region53: #{tpu_custom_call.1} parent=47 // pred_check
          %p427 = pneg %p89
        $region54: #{tpu_custom_call.1} parent=47 // pred_check_branch
          %429 = sbr.rel (%p427) target = $region56
        $region55: #{tpu_custom_call.1} parent=47 // pred_region
          %s430 = sand.u32 %s29, 1
          %s431 = scalar_lea.sflag [#allocation9], %s430
          %s432 = sand.u32 %s79, 1
          %s433 = smul.addr %s432, 16
          %s434 = scalar_lea.vmem [#allocation8], %s433
          %s436 = ssub.s32 256, 256
          %437 = vsyncadd %s431, %s436
          %s438 = smul.addr %s36, 2
          %s439 = smul.addr %s438, 128
          %s440 = scalar_lea.hbm %s1, %s439
          %s441 = sshll.u32 %s434, 4
          %s442 = int_to_ptr.vmem [resolvable:$true] %s441
          %447 = dma.hbm_to_vmem [thread:$0]  %s440, 256, %s442, %s431, 128, 128, 8
        $region56: #{tpu_custom_call.1} parent=47 // pred_fallthru
          _
      $region48: #{tpu_custom_call.1} parent=5 // pred_fallthru
        _
      %p448 = scmp.le.s32.totalorder 1, %s29
      %p449 = scmp.lt.s32.totalorder %s29, 3
      %p450 = pnand %p448, %p449
      %p451 = pneg %p450
      // Predicated region
      $region57: #{tpu_custom_call.1} parent=5 // pred_check
        _
      $region58: #{tpu_custom_call.1} parent=5 // pred_check_branch
        %453 = sbr.rel (%p450) target = $region60
      $region59: #{tpu_custom_call.1} parent=5 // pred_region
        %s454 = ssub.s32 %s29, 1
        %s455 = sand.u32 %s56, 1
        %s456 = scalar_lea.sflag [#allocation6], %s455
        %s457 = sand.u32 %s56, 1
        %s458 = smul.addr %s457, 16
        %s459 = scalar_lea.vmem [#allocation5], %s458
        // Predicated region
        $region61: #{tpu_custom_call.1} parent=59 // pred_check
          %p460 = pneg %p69
        $region62: #{tpu_custom_call.1} parent=59 // pred_check_branch
          %462 = sbr.rel (%p460) target = $region64
        $region63: #{tpu_custom_call.1} parent=59 // pred_region
          %463 = dma.done %s456, 256
        $region64: #{tpu_custom_call.1} parent=59 // pred_fallthru
          _
        %s464 = sand.u32 %s34, 1
        %s465 = scalar_lea.sflag [#allocation9], %s464
        %s466 = sand.u32 %s82, 1
        %s467 = smul.addr %s466, 16
        %s468 = scalar_lea.vmem [#allocation8], %s467
        // Predicated region
        $region65: #{tpu_custom_call.1} parent=59 // pred_check
          %p469 = pneg %p95
        $region66: #{tpu_custom_call.1} parent=59 // pred_check_branch
          %471 = sbr.rel (%p469) target = $region68
        $region67: #{tpu_custom_call.1} parent=59 // pred_region
          %472 = dma.done %s465, 256
        $region68: #{tpu_custom_call.1} parent=59 // pred_fallthru
          _
        // Predicated region
        $region69: #{tpu_custom_call.1} parent=59 // pred_check
          %p473 = pneg %p116
        $region70: #{tpu_custom_call.1} parent=59 // pred_check_branch
          %475 = sbr.rel (%p473) target = $region72
        $region71: #{tpu_custom_call.1} parent=59 // pred_region
          %476 = dma.done [#allocation9], 256
        $region72: #{tpu_custom_call.1} parent=59 // pred_fallthru
          _
        // Predicated region
        $region73: #{tpu_custom_call.1} parent=59 // pred_check
          %p477 = pneg %p137
        $region74: #{tpu_custom_call.1} parent=59 // pred_check_branch
          %479 = sbr.rel (%p477) target = $region76
        $region75: #{tpu_custom_call.1} parent=59 // pred_region
          %480 = dma.done [#allocation12], 16
        $region76: #{tpu_custom_call.1} parent=59 // pred_fallthru
          _
        // Predicated region
        $region77: #{tpu_custom_call.1} parent=59 // pred_check
          %p481 = pneg %p158
        $region78: #{tpu_custom_call.1} parent=59 // pred_check_branch
          %483 = sbr.rel (%p481) target = $region80
        $region79: #{tpu_custom_call.1} parent=59 // pred_region
          %484 = dma.done [#allocation12], 256
        $region80: #{tpu_custom_call.1} parent=59 // pred_fallthru
          _
        // Predicated region
        $region81: #{tpu_custom_call.1} parent=59 // pred_check
          %p485 = pneg %p179
        $region82: #{tpu_custom_call.1} parent=59 // pred_check_branch
          %487 = sbr.rel (%p485) target = $region84
        $region83: #{tpu_custom_call.1} parent=59 // pred_region
          %488 = dma.done [#allocation15], 16
        $region84: #{tpu_custom_call.1} parent=59 // pred_fallthru
          _
        // Predicated region
        $region85: #{tpu_custom_call.1} parent=59 // pred_check
          %p489 = pneg %p200
        $region86: #{tpu_custom_call.1} parent=59 // pred_check_branch
          %491 = sbr.rel (%p489) target = $region88
        $region87: #{tpu_custom_call.1} parent=59 // pred_region
          %492 = dma.done [#allocation15], 256
        $region88: #{tpu_custom_call.1} parent=59 // pred_fallthru
          _
        // Predicated region
        $region89: #{tpu_custom_call.1} parent=59 // pred_check
          %p493 = pneg %p221
        $region90: #{tpu_custom_call.1} parent=59 // pred_check_branch
          %495 = sbr.rel (%p493) target = $region92
        $region91: #{tpu_custom_call.1} parent=59 // pred_region
          %496 = dma.done [#allocation18], 16
        $region92: #{tpu_custom_call.1} parent=59 // pred_fallthru
          _
        // Predicated region
        $region93: #{tpu_custom_call.1} parent=59 // pred_check
          %p497 = pneg %p242
        $region94: #{tpu_custom_call.1} parent=59 // pred_check_branch
          %499 = sbr.rel (%p497) target = $region96
        $region95: #{tpu_custom_call.1} parent=59 // pred_region
          %500 = dma.done [#allocation18], 16
        $region96: #{tpu_custom_call.1} parent=59 // pred_fallthru
          _
        // Predicated region
        $region97: #{tpu_custom_call.1} parent=59 // pred_check
          %p501 = pneg %p263
        $region98: #{tpu_custom_call.1} parent=59 // pred_check_branch
          %503 = sbr.rel (%p501) target = $region100
        $region99: #{tpu_custom_call.1} parent=59 // pred_region
          %504 = dma.done [#allocation21], 16
        $region100: #{tpu_custom_call.1} parent=59 // pred_fallthru
          _
        %s505 = sand.u32 %s56, 1
        %s506 = scalar_lea.sflag [#allocation6], %s505
        %s507 = sand.u32 %s56, 1
        %s508 = smul.addr %s507, 16
        %s509 = scalar_lea.vmem [#allocation5], %s508
        %p510 = pneg %p69
        %p511 = pneg %p66
        %s512 = sand.u32 %s34, 1
        %s513 = scalar_lea.sflag [#allocation9], %s512
        %s514 = sand.u32 %s82, 1
        %s515 = smul.addr %s514, 16
        %s516 = scalar_lea.vmem [#allocation8], %s515
        %p517 = pneg %p95
        %p518 = pneg %p92
        %p519 = pneg %p116
        %p520 = pneg %p113
        %p521 = pneg %p137
        %p522 = pneg %p134
        %p523 = pneg %p158
        %p524 = pneg %p155
        %p525 = pneg %p179
        %p526 = pneg %p176
        %p527 = pneg %p200
        %p528 = pneg %p197
        %p529 = pneg %p221
        %p530 = pneg %p218
        %p531 = pneg %p242
        %p532 = pneg %p239
        %p533 = pneg %p263
        %p534 = pneg %p260
        %p535 = pneg %p291
        %p536 = pneg %p288
        %s537 = sand.u32 %s278, 1
        %s538 = scalar_lea.sflag [#allocation7], %s537
        %s539 = sand.u32 %s278, 1
        %s540 = smul.addr %s539, 16
        %s541 = scalar_lea.vmem [#allocation22], %s540
        %s542 = smul.u32 2, %s39
        %s543 = smul.u32 2, %s39
        %p545 = scmp.eq.s32.totalorder %s39, 0
        // Predicated region
        $region101: #{tpu_custom_call.1} parent=59 // pred_check
          %p546 = pneg %p545
        $region102: #{tpu_custom_call.1} parent=59 // pred_check_branch
          %548 = sbr.rel (%p546) target = $region104
        $region103: #{tpu_custom_call.1} parent=59 // pred_region
          %v549 = vld [vmem:[%s468] sm:$0xff]
          %v550 = vld [vmem:[%s468 + $0x8] sm:$0xff]
          %v551 = vpack.c.bf16 %v550, %v549
          %v552 = vld [vmem:[#allocation13] sm:$0xf]
          %v553 = vld [vmem:[#allocation13 + $0x4] sm:$0xf]
          %v554 = vld [vmem:[#allocation13 + $0x8] sm:$0xf]
          %v555 = vld [vmem:[#allocation13 + $0xc] sm:$0xf]
          %v556 = vld [vmem:[#allocation14] sm:$0x1]
          %v558 = vlaneseq
          %v559 = vshrl.u32 %v558, 7
          %v560 = vsub.s32 0, %v559
          %v561 = vrot.slane %v556, %v560
          %v567 = vunpack.c.l.b16 %v552
          %v568 = vunpack.c.l.b16 %v553
          %v569 = vunpack.c.l.b16 %v554
          %v570 = vunpack.c.l.b16 %v555
          %v571 = vpack.c.b16 %v568, %v567
          %v572 = vpack.c.b16 %v570, %v569
          %vm575 = vcmask 261120
          %v577 = vsel %vm575, %v551, 0
          %579 = vmatprep.subr.bf16.mxu0 0
          %580 = vmatpush1.bf16.msra.mxu0 %v571
          %581 = vmatprep.subr.bf16.mxu0 0
          %582 = vmatpush1.bf16.msra.mxu0 %v572
          %583 = vmatprep.subr.bf16.mxu0 0
          %584 = vmatpush1.bf16.msra.mxu0 0
          %585 = vmatprep.subr.bf16.mxu0 0
          %586 = vmatpush1.bf16.msra.mxu0 0
          %587 = vmatprep.subr.bf16.mxu0 0
          %588 = vmatpush1.bf16.msra.mxu0 0
          %589 = vmatprep.subr.bf16.mxu0 0
          %590 = vmatpush1.bf16.msra.mxu0 0
          %591 = vmatprep.subr.bf16.mxu0 0
          %592 = vmatpush1.bf16.msra.mxu0 0
          %593 = vmatprep.subr.bf16.mxu0 0
          %594 = vmatpush1.bf16.msra.mxu0 0
          %595 = vmatprep.subr.bf16.mxu0 0
          %596 = vmatpush1.bf16.msra.mxu0 0
          %597 = vmatprep.subr.bf16.mxu0 0
          %598 = vmatpush1.bf16.msra.mxu0 0
          %599 = vmatprep.subr.bf16.mxu0 0
          %600 = vmatpush1.bf16.msra.mxu0 0
          %601 = vmatprep.subr.bf16.mxu0 0
          %602 = vmatpush1.bf16.msra.mxu0 0
          %603 = vmatprep.subr.bf16.mxu0 0
          %604 = vmatpush1.bf16.msra.mxu0 0
          %605 = vmatprep.subr.bf16.mxu0 0
          %606 = vmatpush1.bf16.msra.mxu0 0
          %607 = vmatprep.subr.bf16.mxu0 0
          %608 = vmatpush1.bf16.msra.mxu0 0
          %609 = vmatprep.subr.bf16.mxu0 0
          %610 = vmatpush1.bf16.msra.mxu0 0
          %611 = vmatprep.mubr.bf16.mxu0 0
          %612 = vmatmul.mubr.bf16.gmra.mrb[0].mxu0 %v577
          %v613 = vpop.f32.mrb[0].mxu0
          %v614 = vadd.f32 %v561, %v613
          %v615 = vpop.f32.mrb[0].mxu0
          %v616 = vpop.f32.mrb[0].mxu0
          %v617 = vadd.f32 %v561, %v616
          %v618 = vpop.f32.mrb[0].mxu0
          %619 = vdwg.mxu0
          %v620 = vld [vmem:[#allocation16] sm:$0xf]
          %v621 = vld [vmem:[#allocation16 + $0x4] sm:$0xf]
          %v622 = vld [vmem:[#allocation16 + $0x8] sm:$0xf]
          %v623 = vld [vmem:[#allocation16 + $0xc] sm:$0xf]
          %v624 = vld [vmem:[#allocation17] sm:$0x1]
          %v626 = vlaneseq
          %v627 = vshrl.u32 %v626, 7
          %v628 = vsub.s32 0, %v627
          %v629 = vrot.slane %v624, %v628
          %v635 = vunpack.c.l.b16 %v620
          %v636 = vunpack.c.l.b16 %v621
          %v637 = vunpack.c.l.b16 %v622
          %v638 = vunpack.c.l.b16 %v623
          %v639 = vpack.c.b16 %v636, %v635
          %v640 = vpack.c.b16 %v638, %v637
          %643 = vmatprep.subr.bf16.mxu0 0
          %644 = vmatpush1.bf16.msra.mxu0 %v639
          %645 = vmatprep.subr.bf16.mxu0 0
          %646 = vmatpush1.bf16.msra.mxu0 %v640
          %647 = vmatprep.subr.bf16.mxu0 0
          %648 = vmatpush1.bf16.msra.mxu0 0
          %649 = vmatprep.subr.bf16.mxu0 0
          %650 = vmatpush1.bf16.msra.mxu0 0
          %651 = vmatprep.subr.bf16.mxu0 0
          %652 = vmatpush1.bf16.msra.mxu0 0
          %653 = vmatprep.subr.bf16.mxu0 0
          %654 = vmatpush1.bf16.msra.mxu0 0
          %655 = vmatprep.subr.bf16.mxu0 0
          %656 = vmatpush1.bf16.msra.mxu0 0
          %657 = vmatprep.subr.bf16.mxu0 0
          %658 = vmatpush1.bf16.msra.mxu0 0
          %659 = vmatprep.subr.bf16.mxu0 0
          %660 = vmatpush1.bf16.msra.mxu0 0
          %661 = vmatprep.subr.bf16.mxu0 0
          %662 = vmatpush1.bf16.msra.mxu0 0
          %663 = vmatprep.subr.bf16.mxu0 0
          %664 = vmatpush1.bf16.msra.mxu0 0
          %665 = vmatprep.subr.bf16.mxu0 0
          %666 = vmatpush1.bf16.msra.mxu0 0
          %667 = vmatprep.subr.bf16.mxu0 0
          %668 = vmatpush1.bf16.msra.mxu0 0
          %669 = vmatprep.subr.bf16.mxu0 0
          %670 = vmatpush1.bf16.msra.mxu0 0
          %671 = vmatprep.subr.bf16.mxu0 0
          %672 = vmatpush1.bf16.msra.mxu0 0
          %673 = vmatprep.subr.bf16.mxu0 0
          %674 = vmatpush1.bf16.msra.mxu0 0
          %675 = vmatprep.mubr.bf16.mxu0 0
          %676 = vmatmul.mubr.bf16.gmra.mrb[0].mxu0 %v577
          %v677 = vpop.f32.mrb[0].mxu0
          %v678 = vadd.f32 %v629, %v677
          %v679 = vpop.f32.mrb[0].mxu0
          %v680 = vpop.f32.mrb[0].mxu0
          %v681 = vadd.f32 %v629, %v680
          %v682 = vpop.f32.mrb[0].mxu0
          %683 = vdwg.mxu0
          %684 = vxpose.xlu0.b32.start [1/16] %v614, 128
          %685 = vxpose.xlu0.b32.cont [2/16] %v617, 128
          %686 = vxpose.xlu0.b32.cont [3/16] 0.0, 128
          %687 = vxpose.xlu0.b32.cont [4/16] 0.0, 128
          %688 = vxpose.xlu0.b32.cont [5/16] 0.0, 128
          %689 = vxpose.xlu0.b32.cont [6/16] 0.0, 128
          %690 = vxpose.xlu0.b32.cont [7/16] 0.0, 128
          %691 = vxpose.xlu0.b32.cont [8/16] 0.0, 128
          %692 = vxpose.xlu0.b32.cont [9/16] 0.0, 128
          %693 = vxpose.xlu0.b32.cont [10/16] 0.0, 128
          %694 = vxpose.xlu0.b32.cont [11/16] 0.0, 128
          %695 = vxpose.xlu0.b32.cont [12/16] 0.0, 128
          %696 = vxpose.xlu0.b32.cont [13/16] 0.0, 128
          %697 = vxpose.xlu0.b32.cont [14/16] 0.0, 128
          %698 = vxpose.xlu0.b32.cont [15/16] 0.0, 128
          %699 = vxpose.xlu0.b32.end [16/16] 0.0, 128
          %v700 = vpop.trf.xlu0
          %v701 = vpop.trf.xlu0
          %v702 = vpop.trf.xlu0
          %v703 = vpop.trf.xlu0
          %v704 = vpop.trf.xlu0
          %v705 = vpop.trf.xlu0
          %v706 = vpop.trf.xlu0
          %v707 = vpop.trf.xlu0
          %v708 = vpop.trf.xlu0
          %v709 = vpop.trf.xlu0
          %v710 = vpop.trf.xlu0
          %v711 = vpop.trf.xlu0
          %v712 = vpop.trf.xlu0
          %v713 = vpop.trf.xlu0
          %v714 = vpop.trf.xlu0
          %v715 = vpop.trf.xlu0
          %v716 = vpack.c.bf16 %v701, %v700
          %v717 = vpack.c.bf16 %v703, %v702
          %vm718 = vcmask 130048
          %719 = vst.msk [vmem:[#allocation2] sm:$0xff] %vm718, %v716
          %720 = vst.msk [vmem:[#allocation2 + $0x8] sm:$0xff] %vm718, %v717
          %v721 = vpack.c.bf16 %v681, %v678
          %722 = vst.msk [vmem:[#allocation3] sm:$0xff] %vm575, %v721
        $region104: #{tpu_custom_call.1} parent=59 // pred_fallthru
          _
        %v723 = vld [vmem:[%s459] sm:$0xff]
        %v724 = vld [vmem:[%s459 + $0x8] sm:$0xff]
        %v725 = vpack.c.bf16 %v724, %v723
        %v726 = vld [vmem:[#allocation10] sm:$0xf]
        %v727 = vld [vmem:[#allocation10 + $0x4] sm:$0xf]
        %v728 = vld [vmem:[#allocation10 + $0x8] sm:$0xf]
        %v729 = vld [vmem:[#allocation10 + $0xc] sm:$0xf]
        %v730 = vld [vmem:[#allocation11] sm:$0x1]
        %v732 = vlaneseq
        %v733 = vshrl.u32 %v732, 7
        %v734 = vsub.s32 0, %v733
        %v735 = vrot.slane %v730, %v734
        %v741 = vunpack.c.l.b16 %v726
        %v742 = vunpack.c.l.b16 %v727
        %v743 = vunpack.c.l.b16 %v728
        %v744 = vunpack.c.l.b16 %v729
        %v745 = vpack.c.b16 %v742, %v741
        %v746 = vpack.c.b16 %v744, %v743
        %vm749 = vcmask 261120
        %v751 = vsel %vm749, %v725, 0
        %753 = vmatprep.subr.bf16.mxu0 0
        %754 = vmatpush1.bf16.msra.mxu0 %v745
        %755 = vmatprep.subr.bf16.mxu0 0
        %756 = vmatpush1.bf16.msra.mxu0 %v746
        %757 = vmatprep.subr.bf16.mxu0 0
        %758 = vmatpush1.bf16.msra.mxu0 0
        %759 = vmatprep.subr.bf16.mxu0 0
        %760 = vmatpush1.bf16.msra.mxu0 0
        %761 = vmatprep.subr.bf16.mxu0 0
        %762 = vmatpush1.bf16.msra.mxu0 0
        %763 = vmatprep.subr.bf16.mxu0 0
        %764 = vmatpush1.bf16.msra.mxu0 0
        %765 = vmatprep.subr.bf16.mxu0 0
        %766 = vmatpush1.bf16.msra.mxu0 0
        %767 = vmatprep.subr.bf16.mxu0 0
        %768 = vmatpush1.bf16.msra.mxu0 0
        %769 = vmatprep.subr.bf16.mxu0 0
        %770 = vmatpush1.bf16.msra.mxu0 0
        %771 = vmatprep.subr.bf16.mxu0 0
        %772 = vmatpush1.bf16.msra.mxu0 0
        %773 = vmatprep.subr.bf16.mxu0 0
        %774 = vmatpush1.bf16.msra.mxu0 0
        %775 = vmatprep.subr.bf16.mxu0 0
        %776 = vmatpush1.bf16.msra.mxu0 0
        %777 = vmatprep.subr.bf16.mxu0 0
        %778 = vmatpush1.bf16.msra.mxu0 0
        %779 = vmatprep.subr.bf16.mxu0 0
        %780 = vmatpush1.bf16.msra.mxu0 0
        %781 = vmatprep.subr.bf16.mxu0 0
        %782 = vmatpush1.bf16.msra.mxu0 0
        %783 = vmatprep.subr.bf16.mxu0 0
        %784 = vmatpush1.bf16.msra.mxu0 0
        %785 = vmatprep.mubr.bf16.mxu0 0
        %786 = vmatmul.mubr.bf16.gmra.mrb[0].mxu0 %v751
        %v787 = vpop.f32.mrb[0].mxu0
        %v788 = vadd.f32 %v735, %v787
        %v789 = vpop.f32.mrb[0].mxu0
        %v790 = vpop.f32.mrb[0].mxu0
        %v791 = vadd.f32 %v735, %v790
        %v792 = vpop.f32.mrb[0].mxu0
        %793 = vdwg.mxu0
        %v794 = vmul.f32 %v788, 0.35355338
        %v795 = vmul.f32 %v791, 0.35355338
        %v796 = vpack.c.bf16 %v795, %v794
        %v797 = vld [vmem:[#allocation2] sm:$0xff]
        %v798 = vld [vmem:[#allocation2 + $0x8] sm:$0xff]
        %v799 = vld [vmem:[#allocation3] sm:$0xff]
        %s800 = smul.u32 %s39, 16
        %v801 = vlaneseq
        %v802 = vshrl.u32 %v801, 7
        %v803 = vadd.s32 %v802, 8
        %v804 = vstv %s800
        %v805 = vadd.s32 %v802, %v804
        %v806 = vadd.s32 %v803, %v804
        %v807 = vlaneseq
        %v808 = vand.u32 %v807, 127
        %vm809 = vcmp.gt.s32.totalorder %v808, %v805
        %vm810 = vcmp.gt.s32.totalorder %v808, %v806
        %v811 = vsel %vm809, -1e+30, 0.0
        %v812 = vsel %vm810, -1e+30, 0.0
        %vm813 = vcmask 64512
        %v815 = vsel %vm813, %v796, 0
        %vm817 = vcmask 1043456
        %v819 = vsel %vm817, %v797, 0
        %821 = vmatprep.subr.bf16.mxu0 0
        %822 = vmatpush1.bf16.msra.mxu0 %v819
        %823 = vmatprep.subr.bf16.mxu0 0
        %824 = vmatpush1.bf16.msra.mxu0 0
        %825 = vmatprep.subr.bf16.mxu0 0
        %826 = vmatpush1.bf16.msra.mxu0 0
        %827 = vmatprep.subr.bf16.mxu0 0
        %828 = vmatpush1.bf16.msra.mxu0 0
        %829 = vmatprep.subr.bf16.mxu0 0
        %830 = vmatpush1.bf16.msra.mxu0 0
        %831 = vmatprep.subr.bf16.mxu0 0
        %832 = vmatpush1.bf16.msra.mxu0 0
        %833 = vmatprep.subr.bf16.mxu0 0
        %834 = vmatpush1.bf16.msra.mxu0 0
        %835 = vmatprep.subr.bf16.mxu0 0
        %836 = vmatpush1.bf16.msra.mxu0 0
        %837 = vmatprep.subr.bf16.mxu0 0
        %838 = vmatpush1.bf16.msra.mxu0 0
        %839 = vmatprep.subr.bf16.mxu0 0
        %840 = vmatpush1.bf16.msra.mxu0 0
        %841 = vmatprep.subr.bf16.mxu0 0
        %842 = vmatpush1.bf16.msra.mxu0 0
        %843 = vmatprep.subr.bf16.mxu0 0
        %844 = vmatpush1.bf16.msra.mxu0 0
        %845 = vmatprep.subr.bf16.mxu0 0
        %846 = vmatpush1.bf16.msra.mxu0 0
        %847 = vmatprep.subr.bf16.mxu0 0
        %848 = vmatpush1.bf16.msra.mxu0 0
        %849 = vmatprep.subr.bf16.mxu0 0
        %850 = vmatpush1.bf16.msra.mxu0 0
        %851 = vmatprep.subr.bf16.mxu0 0
        %852 = vmatpush1.bf16.msra.mxu0 0
        %853 = vmatprep.mubr.bf16.mxu0 0
        %854 = vmatmul.mubr.bf16.gmra.mrb[0].mxu0 %v815
        %v855 = vpop.f32.mrb[0].mxu0
        %v856 = vadd.f32 %v811, %v855
        %v857 = vpop.f32.mrb[0].mxu0
        %v858 = vpop.f32.mrb[0].mxu0
        %v859 = vadd.f32 %v812, %v858
        %v860 = vpop.f32.mrb[0].mxu0
        %861 = vdwg.mxu0
        %vm862 = vcmask 130048
        %v863 = vsel %vm862, %v856, -inf
        %864 = vmax.xlane.f32.xlu0 %v863
        %v865 = vpop.xlane.xlu0 %864
        %v866 = vsel %vm862, %v859, -inf
        %867 = vmax.xlane.f32.xlu0 %v866
        %v868 = vpop.xlane.xlu0 %867
        %v869 = vsub.f32 %v856, %v865
        %v870 = vsub.f32 %v859, %v868
        %v871 = vmul.f32 %v869, 1.442695
        %v872 = vpow.pop %v871
        %v873 = vmul.f32 %v870, 1.442695
        %v874 = vpow.pop %v873
        %v875 = vsel %vm862, %v872, 0.0
        %876 = vadd.xlane.f32.xlu0 %v875
        %v877 = vpop.xlane.xlu0 %876
        %v878 = vsel %vm862, %v874, 0.0
        %879 = vadd.xlane.f32.xlu0 %v878
        %v880 = vpop.xlane.xlu0 %879
        %v881 = vpack.c.bf16 %v874, %v872
        %v883 = vsel %vm862, %v881, 0
        %885 = vmatprep.subr.bf16.mxu0 0
        %886 = vmatpush1.bf16.msra.mxu0 %v799
        %887 = vmatprep.subr.bf16.mxu0 0
        %888 = vmatpush1.bf16.msra.mxu0 0
        %889 = vmatprep.subr.bf16.mxu0 0
        %890 = vmatpush1.bf16.msra.mxu0 0
        %891 = vmatprep.subr.bf16.mxu0 0
        %892 = vmatpush1.bf16.msra.mxu0 0
        %893 = vmatprep.subr.bf16.mxu0 0
        %894 = vmatpush1.bf16.msra.mxu0 0
        %895 = vmatprep.subr.bf16.mxu0 0
        %896 = vmatpush1.bf16.msra.mxu0 0
        %897 = vmatprep.subr.bf16.mxu0 0
        %898 = vmatpush1.bf16.msra.mxu0 0
        %899 = vmatprep.subr.bf16.mxu0 0
        %900 = vmatpush1.bf16.msra.mxu0 0
        %901 = vmatprep.subr.bf16.mxu0 0
        %902 = vmatpush1.bf16.msra.mxu0 0
        %903 = vmatprep.subr.bf16.mxu0 0
        %904 = vmatpush1.bf16.msra.mxu0 0
        %905 = vmatprep.subr.bf16.mxu0 0
        %906 = vmatpush1.bf16.msra.mxu0 0
        %907 = vmatprep.subr.bf16.mxu0 0
        %908 = vmatpush1.bf16.msra.mxu0 0
        %909 = vmatprep.subr.bf16.mxu0 0
        %910 = vmatpush1.bf16.msra.mxu0 0
        %911 = vmatprep.subr.bf16.mxu0 0
        %912 = vmatpush1.bf16.msra.mxu0 0
        %913 = vmatprep.subr.bf16.mxu0 0
        %914 = vmatpush1.bf16.msra.mxu0 0
        %915 = vmatprep.subr.bf16.mxu0 0
        %916 = vmatpush1.bf16.msra.mxu0 0
        %917 = vmatprep.mubr.bf16.mxu0 0
        %918 = vmatmul.mubr.bf16.gmra.mrb[0].mxu0 %v883
        %v919 = vpop.f32.mrb[0].mxu0
        %v920 = vadd.f32 0.0, %v919
        %v921 = vpop.f32.mrb[0].mxu0
        %v922 = vpop.f32.mrb[0].mxu0
        %v923 = vadd.f32 0.0, %v922
        %v924 = vpop.f32.mrb[0].mxu0
        %925 = vdwg.mxu0
        %v926 = vrcp.pop %v877
        %v927 = vrcp.pop %v880
        %v928 = vmul.f32 %v920, %v926
        %v929 = vmul.f32 %v923, %v927
        %930 = vst.msk [vmem:[#allocation4] sm:$0xff] %vm813, %v928
        %931 = vst.msk [vmem:[#allocation4 + $0x8] sm:$0xff] %vm813, %v929
        %933 = vrot.lane.b32.xlu0 %v796, 120
        %v934 = vpop.permute.xlu0 %933
        %v936 = vrot.slane %v797, 4
        %v938 = vsel %vm813, %v934, 0
        %v941 = vsel %vm817, %v936, 0
        %943 = vmatprep.subr.bf16.mxu0 0
        %944 = vmatpush1.bf16.msra.mxu0 %v941
        %945 = vmatprep.subr.bf16.mxu0 0
        %946 = vmatpush1.bf16.msra.mxu0 0
        %947 = vmatprep.subr.bf16.mxu0 0
        %948 = vmatpush1.bf16.msra.mxu0 0
        %949 = vmatprep.subr.bf16.mxu0 0
        %950 = vmatpush1.bf16.msra.mxu0 0
        %951 = vmatprep.subr.bf16.mxu0 0
        %952 = vmatpush1.bf16.msra.mxu0 0
        %953 = vmatprep.subr.bf16.mxu0 0
        %954 = vmatpush1.bf16.msra.mxu0 0
        %955 = vmatprep.subr.bf16.mxu0 0
        %956 = vmatpush1.bf16.msra.mxu0 0
        %957 = vmatprep.subr.bf16.mxu0 0
        %958 = vmatpush1.bf16.msra.mxu0 0
        %959 = vmatprep.subr.bf16.mxu0 0
        %960 = vmatpush1.bf16.msra.mxu0 0
        %961 = vmatprep.subr.bf16.mxu0 0
        %962 = vmatpush1.bf16.msra.mxu0 0
        %963 = vmatprep.subr.bf16.mxu0 0
        %964 = vmatpush1.bf16.msra.mxu0 0
        %965 = vmatprep.subr.bf16.mxu0 0
        %966 = vmatpush1.bf16.msra.mxu0 0
        %967 = vmatprep.subr.bf16.mxu0 0
        %968 = vmatpush1.bf16.msra.mxu0 0
        %969 = vmatprep.subr.bf16.mxu0 0
        %970 = vmatpush1.bf16.msra.mxu0 0
        %971 = vmatprep.subr.bf16.mxu0 0
        %972 = vmatpush1.bf16.msra.mxu0 0
        %973 = vmatprep.subr.bf16.mxu0 0
        %974 = vmatpush1.bf16.msra.mxu0 0
        %975 = vmatprep.mubr.bf16.mxu0 0
        %976 = vmatmul.mubr.bf16.gmra.mrb[0].mxu0 %v938
        %v977 = vpop.f32.mrb[0].mxu0
        %v978 = vadd.f32 %v811, %v977
        %v979 = vpop.f32.mrb[0].mxu0
        %v980 = vpop.f32.mrb[0].mxu0
        %v981 = vadd.f32 %v812, %v980
        %v982 = vpop.f32.mrb[0].mxu0
        %983 = vdwg.mxu0
        %v984 = vsel %vm862, %v978, -inf
        %985 = vmax.xlane.f32.xlu0 %v984
        %v986 = vpop.xlane.xlu0 %985
        %v987 = vsel %vm862, %v981, -inf
        %988 = vmax.xlane.f32.xlu0 %v987
        %v989 = vpop.xlane.xlu0 %988
        %v990 = vsub.f32 %v978, %v986
        %v991 = vsub.f32 %v981, %v989
        %v992 = vmul.f32 %v990, 1.442695
        %v993 = vpow.pop %v992
        %v994 = vmul.f32 %v991, 1.442695
        %v995 = vpow.pop %v994
        %v996 = vsel %vm862, %v993, 0.0
        %997 = vadd.xlane.f32.xlu0 %v996
        %v998 = vpop.xlane.xlu0 %997
        %v999 = vsel %vm862, %v995, 0.0
        %1000 = vadd.xlane.f32.xlu0 %v999
        %v1001 = vpop.xlane.xlu0 %1000
        %v1002 = vpack.c.bf16 %v995, %v993
        %1004 = vrot.lane.b32.xlu0 %v799, 120
        %v1005 = vpop.permute.xlu0 %1004
        %v1008 = vsel %vm862, %v1002, 0
        %1010 = vmatprep.subr.bf16.mxu0 0
        %1011 = vmatpush1.bf16.msra.mxu0 %v1005
        %1012 = vmatprep.subr.bf16.mxu0 0
        %1013 = vmatpush1.bf16.msra.mxu0 0
        %1014 = vmatprep.subr.bf16.mxu0 0
        %1015 = vmatpush1.bf16.msra.mxu0 0
        %1016 = vmatprep.subr.bf16.mxu0 0
        %1017 = vmatpush1.bf16.msra.mxu0 0
        %1018 = vmatprep.subr.bf16.mxu0 0
        %1019 = vmatpush1.bf16.msra.mxu0 0
        %1020 = vmatprep.subr.bf16.mxu0 0
        %1021 = vmatpush1.bf16.msra.mxu0 0
        %1022 = vmatprep.subr.bf16.mxu0 0
        %1023 = vmatpush1.bf16.msra.mxu0 0
        %1024 = vmatprep.subr.bf16.mxu0 0
        %1025 = vmatpush1.bf16.msra.mxu0 0
        %1026 = vmatprep.subr.bf16.mxu0 0
        %1027 = vmatpush1.bf16.msra.mxu0 0
        %1028 = vmatprep.subr.bf16.mxu0 0
        %1029 = vmatpush1.bf16.msra.mxu0 0
        %1030 = vmatprep.subr.bf16.mxu0 0
        %1031 = vmatpush1.bf16.msra.mxu0 0
        %1032 = vmatprep.subr.bf16.mxu0 0
        %1033 = vmatpush1.bf16.msra.mxu0 0
        %1034 = vmatprep.subr.bf16.mxu0 0
        %1035 = vmatpush1.bf16.msra.mxu0 0
        %1036 = vmatprep.subr.bf16.mxu0 0
        %1037 = vmatpush1.bf16.msra.mxu0 0
        %1038 = vmatprep.subr.bf16.mxu0 0
        %1039 = vmatpush1.bf16.msra.mxu0 0
        %1040 = vmatprep.subr.bf16.mxu0 0
        %1041 = vmatpush1.bf16.msra.mxu0 0
        %1042 = vmatprep.mubr.bf16.mxu0 0
        %1043 = vmatmul.mubr.bf16.gmra.mrb[0].mxu0 %v1008
        %v1044 = vpop.f32.mrb[0].mxu0
        %v1045 = vadd.f32 0.0, %v1044
        %v1046 = vpop.f32.mrb[0].mxu0
        %v1047 = vpop.f32.mrb[0].mxu0
        %v1048 = vadd.f32 0.0, %v1047
        %v1049 = vpop.f32.mrb[0].mxu0
        %1050 = vdwg.mxu0
        %v1051 = vrcp.pop %v998
        %v1052 = vrcp.pop %v1001
        %v1053 = vmul.f32 %v1045, %v1051
        %v1054 = vmul.f32 %v1048, %v1052
        %1057 = vrot.lane.b32.xlu0 %v1053, 8
        %v1058 = vpop.permute.xlu0 %1057
        %1059 = vrot.lane.b32.xlu0 %v1054, 8
        %v1060 = vpop.permute.xlu0 %1059
        %vm1063 = vcmask 130112
        %1064 = vst.msk [vmem:[#allocation4] sm:$0xff] %vm1063, %v1058
        %1065 = vst.msk [vmem:[#allocation4 + $0x8] sm:$0xff] %vm1063, %v1060
        %1066 = vrot.lane.b32.xlu0 %v796, 112
        %v1067 = vpop.permute.xlu0 %1066
        %v1069 = vsel %vm813, %v1067, 0
        %v1072 = vsel %vm817, %v798, 0
        %1074 = vmatprep.subr.bf16.mxu0 0
        %1075 = vmatpush1.bf16.msra.mxu0 %v1072
        %1076 = vmatprep.subr.bf16.mxu0 0
        %1077 = vmatpush1.bf16.msra.mxu0 0
        %1078 = vmatprep.subr.bf16.mxu0 0
        %1079 = vmatpush1.bf16.msra.mxu0 0
        %1080 = vmatprep.subr.bf16.mxu0 0
        %1081 = vmatpush1.bf16.msra.mxu0 0
        %1082 = vmatprep.subr.bf16.mxu0 0
        %1083 = vmatpush1.bf16.msra.mxu0 0
        %1084 = vmatprep.subr.bf16.mxu0 0
        %1085 = vmatpush1.bf16.msra.mxu0 0
        %1086 = vmatprep.subr.bf16.mxu0 0
        %1087 = vmatpush1.bf16.msra.mxu0 0
        %1088 = vmatprep.subr.bf16.mxu0 0
        %1089 = vmatpush1.bf16.msra.mxu0 0
        %1090 = vmatprep.subr.bf16.mxu0 0
        %1091 = vmatpush1.bf16.msra.mxu0 0
        %1092 = vmatprep.subr.bf16.mxu0 0
        %1093 = vmatpush1.bf16.msra.mxu0 0
        %1094 = vmatprep.subr.bf16.mxu0 0
        %1095 = vmatpush1.bf16.msra.mxu0 0
        %1096 = vmatprep.subr.bf16.mxu0 0
        %1097 = vmatpush1.bf16.msra.mxu0 0
        %1098 = vmatprep.subr.bf16.mxu0 0
        %1099 = vmatpush1.bf16.msra.mxu0 0
        %1100 = vmatprep.subr.bf16.mxu0 0
        %1101 = vmatpush1.bf16.msra.mxu0 0
        %1102 = vmatprep.subr.bf16.mxu0 0
        %1103 = vmatpush1.bf16.msra.mxu0 0
        %1104 = vmatprep.subr.bf16.mxu0 0
        %1105 = vmatpush1.bf16.msra.mxu0 0
        %1106 = vmatprep.mubr.bf16.mxu0 0
        %1107 = vmatmul.mubr.bf16.gmra.mrb[0].mxu0 %v1069
        %v1108 = vpop.f32.mrb[0].mxu0
        %v1109 = vadd.f32 %v811, %v1108
        %v1110 = vpop.f32.mrb[0].mxu0
        %v1111 = vpop.f32.mrb[0].mxu0
        %v1112 = vadd.f32 %v812, %v1111
        %v1113 = vpop.f32.mrb[0].mxu0
        %1114 = vdwg.mxu0
        %v1115 = vsel %vm862, %v1109, -inf
        %1116 = vmax.xlane.f32.xlu0 %v1115
        %v1117 = vpop.xlane.xlu0 %1116
        %v1118 = vsel %vm862, %v1112, -inf
        %1119 = vmax.xlane.f32.xlu0 %v1118
        %v1120 = vpop.xlane.xlu0 %1119
        %v1121 = vsub.f32 %v1109, %v1117
        %v1122 = vsub.f32 %v1112, %v1120
        %v1123 = vmul.f32 %v1121, 1.442695
        %v1124 = vpow.pop %v1123
        %v1125 = vmul.f32 %v1122, 1.442695
        %v1126 = vpow.pop %v1125
        %v1127 = vsel %vm862, %v1124, 0.0
        %1128 = vadd.xlane.f32.xlu0 %v1127
        %v1129 = vpop.xlane.xlu0 %1128
        %v1130 = vsel %vm862, %v1126, 0.0
        %1131 = vadd.xlane.f32.xlu0 %v1130
        %v1132 = vpop.xlane.xlu0 %1131
        %v1133 = vpack.c.bf16 %v1126, %v1124
        %1134 = vrot.lane.b32.xlu0 %v799, 112
        %v1135 = vpop.permute.xlu0 %1134
        %v1138 = vsel %vm862, %v1133, 0
        %1140 = vmatprep.subr.bf16.mxu0 0
        %1141 = vmatpush1.bf16.msra.mxu0 %v1135
        %1142 = vmatprep.subr.bf16.mxu0 0
        %1143 = vmatpush1.bf16.msra.mxu0 0
        %1144 = vmatprep.subr.bf16.mxu0 0
        %1145 = vmatpush1.bf16.msra.mxu0 0
        %1146 = vmatprep.subr.bf16.mxu0 0
        %1147 = vmatpush1.bf16.msra.mxu0 0
        %1148 = vmatprep.subr.bf16.mxu0 0
        %1149 = vmatpush1.bf16.msra.mxu0 0
        %1150 = vmatprep.subr.bf16.mxu0 0
        %1151 = vmatpush1.bf16.msra.mxu0 0
        %1152 = vmatprep.subr.bf16.mxu0 0
        %1153 = vmatpush1.bf16.msra.mxu0 0
        %1154 = vmatprep.subr.bf16.mxu0 0
        %1155 = vmatpush1.bf16.msra.mxu0 0
        %1156 = vmatprep.subr.bf16.mxu0 0
        %1157 = vmatpush1.bf16.msra.mxu0 0
        %1158 = vmatprep.subr.bf16.mxu0 0
        %1159 = vmatpush1.bf16.msra.mxu0 0
        %1160 = vmatprep.subr.bf16.mxu0 0
        %1161 = vmatpush1.bf16.msra.mxu0 0
        %1162 = vmatprep.subr.bf16.mxu0 0
        %1163 = vmatpush1.bf16.msra.mxu0 0
        %1164 = vmatprep.subr.bf16.mxu0 0
        %1165 = vmatpush1.bf16.msra.mxu0 0
        %1166 = vmatprep.subr.bf16.mxu0 0
        %1167 = vmatpush1.bf16.msra.mxu0 0
        %1168 = vmatprep.subr.bf16.mxu0 0
        %1169 = vmatpush1.bf16.msra.mxu0 0
        %1170 = vmatprep.subr.bf16.mxu0 0
        %1171 = vmatpush1.bf16.msra.mxu0 0
        %1172 = vmatprep.mubr.bf16.mxu0 0
        %1173 = vmatmul.mubr.bf16.gmra.mrb[0].mxu0 %v1138
        %v1174 = vpop.f32.mrb[0].mxu0
        %v1175 = vadd.f32 0.0, %v1174
        %v1176 = vpop.f32.mrb[0].mxu0
        %v1177 = vpop.f32.mrb[0].mxu0
        %v1178 = vadd.f32 0.0, %v1177
        %v1179 = vpop.f32.mrb[0].mxu0
        %1180 = vdwg.mxu0
        %v1181 = vrcp.pop %v1129
        %v1182 = vrcp.pop %v1132
        %v1183 = vmul.f32 %v1175, %v1181
        %v1184 = vmul.f32 %v1178, %v1182
        %1187 = vrot.lane.b32.xlu0 %v1183, 16
        %v1188 = vpop.permute.xlu0 %1187
        %1189 = vrot.lane.b32.xlu0 %v1184, 16
        %v1190 = vpop.permute.xlu0 %1189
        %vm1193 = vcmask 195712
        %1194 = vst.msk [vmem:[#allocation4] sm:$0xff] %vm1193, %v1188
        %1195 = vst.msk [vmem:[#allocation4 + $0x8] sm:$0xff] %vm1193, %v1190
        %1196 = vrot.lane.b32.xlu0 %v796, 104
        %v1197 = vpop.permute.xlu0 %1196
        %v1199 = vrot.slane %v798, 4
        %v1201 = vsel %vm813, %v1197, 0
        %v1204 = vsel %vm817, %v1199, 0
        %1206 = vmatprep.subr.bf16.mxu0 0
        %1207 = vmatpush1.bf16.msra.mxu0 %v1204
        %1208 = vmatprep.subr.bf16.mxu0 0
        %1209 = vmatpush1.bf16.msra.mxu0 0
        %1210 = vmatprep.subr.bf16.mxu0 0
        %1211 = vmatpush1.bf16.msra.mxu0 0
        %1212 = vmatprep.subr.bf16.mxu0 0
        %1213 = vmatpush1.bf16.msra.mxu0 0
        %1214 = vmatprep.subr.bf16.mxu0 0
        %1215 = vmatpush1.bf16.msra.mxu0 0
        %1216 = vmatprep.subr.bf16.mxu0 0
        %1217 = vmatpush1.bf16.msra.mxu0 0
        %1218 = vmatprep.subr.bf16.mxu0 0
        %1219 = vmatpush1.bf16.msra.mxu0 0
        %1220 = vmatprep.subr.bf16.mxu0 0
        %1221 = vmatpush1.bf16.msra.mxu0 0
        %1222 = vmatprep.subr.bf16.mxu0 0
        %1223 = vmatpush1.bf16.msra.mxu0 0
        %1224 = vmatprep.subr.bf16.mxu0 0
        %1225 = vmatpush1.bf16.msra.mxu0 0
        %1226 = vmatprep.subr.bf16.mxu0 0
        %1227 = vmatpush1.bf16.msra.mxu0 0
        %1228 = vmatprep.subr.bf16.mxu0 0
        %1229 = vmatpush1.bf16.msra.mxu0 0
        %1230 = vmatprep.subr.bf16.mxu0 0
        %1231 = vmatpush1.bf16.msra.mxu0 0
        %1232 = vmatprep.subr.bf16.mxu0 0
        %1233 = vmatpush1.bf16.msra.mxu0 0
        %1234 = vmatprep.subr.bf16.mxu0 0
        %1235 = vmatpush1.bf16.msra.mxu0 0
        %1236 = vmatprep.subr.bf16.mxu0 0
        %1237 = vmatpush1.bf16.msra.mxu0 0
        %1238 = vmatprep.mubr.bf16.mxu0 0
        %1239 = vmatmul.mubr.bf16.gmra.mrb[0].mxu0 %v1201
        %v1240 = vpop.f32.mrb[0].mxu0
        %v1241 = vadd.f32 %v811, %v1240
        %v1242 = vpop.f32.mrb[0].mxu0
        %v1243 = vpop.f32.mrb[0].mxu0
        %v1244 = vadd.f32 %v812, %v1243
        %v1245 = vpop.f32.mrb[0].mxu0
        %1246 = vdwg.mxu0
        %v1247 = vsel %vm862, %v1241, -inf
        %1248 = vmax.xlane.f32.xlu0 %v1247
        %v1249 = vpop.xlane.xlu0 %1248
        %v1250 = vsel %vm862, %v1244, -inf
        %1251 = vmax.xlane.f32.xlu0 %v1250
        %v1252 = vpop.xlane.xlu0 %1251
        %v1253 = vsub.f32 %v1241, %v1249
        %v1254 = vsub.f32 %v1244, %v1252
        %v1255 = vmul.f32 %v1253, 1.442695
        %v1256 = vpow.pop %v1255
        %v1257 = vmul.f32 %v1254, 1.442695
        %v1258 = vpow.pop %v1257
        %v1259 = vsel %vm862, %v1256, 0.0
        %1260 = vadd.xlane.f32.xlu0 %v1259
        %v1261 = vpop.xlane.xlu0 %1260
        %v1262 = vsel %vm862, %v1258, 0.0
        %1263 = vadd.xlane.f32.xlu0 %v1262
        %v1264 = vpop.xlane.xlu0 %1263
        %v1265 = vpack.c.bf16 %v1258, %v1256
        %1266 = vrot.lane.b32.xlu0 %v799, 104
        %v1267 = vpop.permute.xlu0 %1266
        %v1270 = vsel %vm862, %v1265, 0
        %1272 = vmatprep.subr.bf16.mxu0 0
        %1273 = vmatpush1.bf16.msra.mxu0 %v1267
        %1274 = vmatprep.subr.bf16.mxu0 0
        %1275 = vmatpush1.bf16.msra.mxu0 0
        %1276 = vmatprep.subr.bf16.mxu0 0
        %1277 = vmatpush1.bf16.msra.mxu0 0
        %1278 = vmatprep.subr.bf16.mxu0 0
        %1279 = vmatpush1.bf16.msra.mxu0 0
        %1280 = vmatprep.subr.bf16.mxu0 0
        %1281 = vmatpush1.bf16.msra.mxu0 0
        %1282 = vmatprep.subr.bf16.mxu0 0
        %1283 = vmatpush1.bf16.msra.mxu0 0
        %1284 = vmatprep.subr.bf16.mxu0 0
        %1285 = vmatpush1.bf16.msra.mxu0 0
        %1286 = vmatprep.subr.bf16.mxu0 0
        %1287 = vmatpush1.bf16.msra.mxu0 0
        %1288 = vmatprep.subr.bf16.mxu0 0
        %1289 = vmatpush1.bf16.msra.mxu0 0
        %1290 = vmatprep.subr.bf16.mxu0 0
        %1291 = vmatpush1.bf16.msra.mxu0 0
        %1292 = vmatprep.subr.bf16.mxu0 0
        %1293 = vmatpush1.bf16.msra.mxu0 0
        %1294 = vmatprep.subr.bf16.mxu0 0
        %1295 = vmatpush1.bf16.msra.mxu0 0
        %1296 = vmatprep.subr.bf16.mxu0 0
        %1297 = vmatpush1.bf16.msra.mxu0 0
        %1298 = vmatprep.subr.bf16.mxu0 0
        %1299 = vmatpush1.bf16.msra.mxu0 0
        %1300 = vmatprep.subr.bf16.mxu0 0
        %1301 = vmatpush1.bf16.msra.mxu0 0
        %1302 = vmatprep.subr.bf16.mxu0 0
        %1303 = vmatpush1.bf16.msra.mxu0 0
        %1304 = vmatprep.mubr.bf16.mxu0 0
        %1305 = vmatmul.mubr.bf16.gmra.mrb[0].mxu0 %v1270
        %v1306 = vpop.f32.mrb[0].mxu0
        %v1307 = vadd.f32 0.0, %v1306
        %v1308 = vpop.f32.mrb[0].mxu0
        %v1309 = vpop.f32.mrb[0].mxu0
        %v1310 = vadd.f32 0.0, %v1309
        %v1311 = vpop.f32.mrb[0].mxu0
        %1312 = vdwg.mxu0
        %v1313 = vrcp.pop %v1261
        %v1314 = vrcp.pop %v1264
        %v1315 = vmul.f32 %v1307, %v1313
        %v1316 = vmul.f32 %v1310, %v1314
        %1319 = vrot.lane.b32.xlu0 %v1315, 24
        %v1320 = vpop.permute.xlu0 %1319
        %1321 = vrot.lane.b32.xlu0 %v1316, 24
        %v1322 = vpop.permute.xlu0 %1321
        %vm1325 = vcmask 261312
        %1326 = vst.msk [vmem:[#allocation4] sm:$0xff] %vm1325, %v1320
        %1327 = vst.msk [vmem:[#allocation4 + $0x8] sm:$0xff] %vm1325, %v1322
        %v1328 = vld [vmem:[#allocation4] sm:$0xff]
        %v1329 = vld [vmem:[#allocation4 + $0x8] sm:$0xff]
        %v1330 = vadd.f32 %v723, %v1328
        %v1331 = vadd.f32 %v724, %v1329
        %v1332 = vld [vmem:[#allocation19] sm:$0x1]
        %v1333 = vld [vmem:[#allocation20] sm:$0x1]
        %v1334 = vsel %vm749, %v1330, 0.0
        %1335 = vadd.xlane.f32.xlu0 %v1334
        %v1336 = vpop.xlane.xlu0 %1335
        %v1337 = vsel %vm749, %v1331, 0.0
        %1338 = vadd.xlane.f32.xlu0 %v1337
        %v1339 = vpop.xlane.xlu0 %1338
        %v1340 = vrcp.pop 32.0
        %v1341 = vmul.f32 %v1336, %v1340
        %v1342 = vmul.f32 %v1339, %v1340
        %v1343 = vsub.f32 %v1330, %v1341
        %v1344 = vsub.f32 %v1331, %v1342
        %v1345 = vmul.f32 %v1343, %v1343
        %v1346 = vmul.f32 %v1344, %v1344
        %v1347 = vsel %vm749, %v1345, 0.0
        %1348 = vadd.xlane.f32.xlu0 %v1347
        %v1349 = vpop.xlane.xlu0 %1348
        %v1350 = vsel %vm749, %v1346, 0.0
        %1351 = vadd.xlane.f32.xlu0 %v1350
        %v1352 = vpop.xlane.xlu0 %1351
        %v1353 = vmul.f32 %v1349, %v1340
        %v1354 = vmul.f32 %v1352, %v1340
        %v1355 = vadd.f32 %v1353, 1e-05
        %v1356 = vadd.f32 %v1354, 1e-05
        %v1357 = vrsqrt.pop %v1355
        %v1358 = vrsqrt.pop %v1356
        %v1359 = vmul.f32 %v1343, %v1357
        %v1360 = vmul.f32 %v1344, %v1358
        %v1362 = vlaneseq
        %v1363 = vshrl.u32 %v1362, 7
        %v1364 = vsub.s32 0, %v1363
        %v1365 = vrot.slane %v1332, %v1364
        %v1367 = vmul.f32 %v1359, %v1365
        %v1368 = vmul.f32 %v1360, %v1365
        %v1370 = vlaneseq
        %v1371 = vshrl.u32 %v1370, 7
        %v1372 = vsub.s32 0, %v1371
        %v1373 = vrot.slane %v1333, %v1372
        %v1375 = vadd.f32 %v1367, %v1373
        %v1376 = vadd.f32 %v1368, %v1373
        %1377 = vst.msk [vmem:[%s541] sm:$0xff] %vm749, %v1375
        %1378 = vst.msk [vmem:[%s541 + $0x8] sm:$0xff] %vm749, %v1376
        %s1379 = sand.u32 %s278, 1
        %s1380 = scalar_lea.sflag [#allocation7], %s1379
        %s1381 = sand.u32 %s278, 1
        %s1382 = smul.addr %s1381, 16
        %s1383 = scalar_lea.vmem [#allocation22], %s1382
        // Predicated region
        $region105: #{tpu_custom_call.1} parent=59 // pred_check
          %p1384 = pneg %p288
        $region106: #{tpu_custom_call.1} parent=59 // pred_check_branch
          %1386 = sbr.rel (%p1384) target = $region108
        $region107: #{tpu_custom_call.1} parent=59 // pred_region
          %s1387 = smul.u32 2, %s39
          %s1389 = ssub.s32 256, 256
          %1390 = vsyncadd %s1380, %s1389
          %s1391 = smul.addr %s38, 2
          %s1392 = sadd.s32 %s1387, %s1391
          %s1393 = smul.addr %s1392, 128
          %s1394 = scalar_lea.hbm %s10, %s1393
          %s1395 = sshll.u32 %s1383, 4
          %s1396 = int_to_ptr.vmem [resolvable:$true] %s1395
          %1401 = dma.vmem_to_hbm [thread:$0]  %s1396, 256, %s1394, %s1380, 128, 128, 8
        $region108: #{tpu_custom_call.1} parent=59 // pred_fallthru
          _
      $region60: #{tpu_custom_call.1} parent=5 // pred_fallthru
        _
      %p1402 = scmp.le.s32.totalorder 2, %s29
      // Predicated region
      $region109: #{tpu_custom_call.1} parent=5 // pred_check
        %p1403 = pneg %p1402
      $region110: #{tpu_custom_call.1} parent=5 // pred_check_branch
        %1405 = sbr.rel (%p1403) target = $region112
      $region111: #{tpu_custom_call.1} parent=5 // pred_region
        %s1406 = ssub.s32 %s29, 2
        // Predicated region
        $region113: #{tpu_custom_call.1} parent=111 // pred_check
          %p1407 = pneg %p294
        $region114: #{tpu_custom_call.1} parent=111 // pred_check_branch
          %1409 = sbr.rel (%p1407) target = $region116
        $region115: #{tpu_custom_call.1} parent=111 // pred_region
          %s1410 = sand.u32 %s279, 1
          %s1411 = scalar_lea.sflag [#allocation7], %s1410
          %s1412 = sand.u32 %s279, 1
          %s1413 = smul.addr %s1412, 16
          %s1414 = scalar_lea.vmem [#allocation22], %s1413
          %1415 = dma.done %s1411, 256
        $region116: #{tpu_custom_call.1} parent=111 // pred_fallthru
          _
      $region112: #{tpu_custom_call.1} parent=5 // pred_fallthru
        _
    $region6: #{tpu_custom_call.1} parent=1 // loop_footer
      %s33 = sadd.s32 1, %s29
    $region7: #{tpu_custom_call.1} parent=1 // loop_footer_branch
      %28 = sbr.rel target = $region3
    $region8: #{tpu_custom_call.1} parent=1 // loop_exit
      _
    %1416 = vsyncpa [#allocation6], 1
    %s1417 = scalar_lea.sflag [#allocation6], 1
    %1418 = vsyncpa %s1417, 1
    %1419 = vsyncpa [#allocation9], 1
    %s1420 = scalar_lea.sflag [#allocation9], 1
    %1421 = vsyncpa %s1420, 1
    %1422 = vsyncpa [#allocation12], 1
    %1423 = vsyncpa [#allocation15], 1
    %1424 = vsyncpa [#allocation18], 1
    %1425 = vsyncpa [#allocation21], 1
    %1426 = vsyncpa [#allocation7], 1
    %s1427 = scalar_lea.sflag [#allocation7], 1
    %1428 = vsyncpa %s1427, 1

</llo_original>
